<compile_context>
chip_gen: v6e
topology: v6e:2x2x1
jax: 0.10.0
libtpu: 0.0.40
codegen_flags: <defaults>
</compile_context>

<pallas_src>
import functools

import jax
import jax.numpy as jnp
from jax.experimental import pallas as pl
from jax.experimental.pallas import tpu as pltpu


# ----------------------------------------------------------------------------
# Quantization helper (plain-JAX glue, mirrors the PyTorch block_quantize_3bit)
# ----------------------------------------------------------------------------
def block_quantize_3bit(x_flat: jnp.ndarray, group_size: int = 32):
    assert x_flat.ndim == 1
    assert x_flat.shape[0] % group_size == 0
    x = x_flat.reshape(-1, group_size)
    x_min = x.min(axis=-1, keepdims=True)
    x_max = x.max(axis=-1, keepdims=True)
    x_norm = (x - x_min) / (x_max - x_min + 1e-8)
    x_quant = jnp.round(x_norm * 7).astype(jnp.int8)
    ranges = jnp.stack([x_min[:, 0], x_max[:, 0]], axis=-1).astype(jnp.float16)
    return x_quant, ranges


# ----------------------------------------------------------------------------
# Pallas kernel: nibble unpack + per-group dequant FMA + bf16 MXU matmuls
# ----------------------------------------------------------------------------
def linear3bit_kernel(x_ref, p_ref, s_ref, z_ref, b_ref, o_ref, acc_ref,
                      *, group_size, dequant_dtype):
    k = pl.program_id(2)

    @pl.when(k == 0)
    def _init():
        acc_ref[...] = jnp.zeros_like(acc_ref)

    # Packed tile: (tk//2, tn) int8.  Low nibble = logical K rows [0, tk//2)
    # of this K tile, high nibble = rows [tk//2, tk).  Unpack with shift/mask.
    p = p_ref[...].astype(jnp.int32)                       # (half, tn)
    half, tn = p.shape
    g_half = half // group_size                            # groups per half

    lo = (p & 7).astype(jnp.float32).astype(dequant_dtype)
    hi = ((p >> 4) & 7).astype(jnp.float32).astype(dequant_dtype)

    scale = s_ref[...].astype(dequant_dtype)               # (2*g_half, tn)
    zero = z_ref[...].astype(dequant_dtype)

    def dequant(codes, s, z):
        c = codes.reshape(g_half, group_size, tn)
        w = c * s[:, None, :] + z[:, None, :]
        return w.reshape(half, tn).astype(jnp.bfloat16)

    w_lo = dequant(lo, scale[:g_half], zero[:g_half])      # (half, tn) bf16
    w_hi = dequant(hi, scale[g_half:], zero[g_half:])      # (half, tn) bf16

    x = x_ref[...]                                         # (tm, tk) bf16
    acc_ref[...] += jnp.dot(x[:, :half], w_lo, preferred_element_type=jnp.float32)
    acc_ref[...] += jnp.dot(x[:, half:], w_hi, preferred_element_type=jnp.float32)

    @pl.when(k == pl.num_programs(2) - 1)
    def _finish():
        o_ref[...] = (acc_ref[...] + b_ref[...]).astype(o_ref.dtype)


# ----------------------------------------------------------------------------
# Load-time weight preparation (hoisted out of the forward path)
# ----------------------------------------------------------------------------
def _dequant_compute_dtype():
    """bf16 dequant on chips with bf16 VALUs (v6e/v7x); f32 elsewhere (v5e)."""
    try:
        kind = jax.devices()[0].device_kind.lower()
    except Exception:
        return jnp.float32
    if "v6" in kind or "v7" in kind:
        return jnp.bfloat16
    return jnp.float32


def _pick_k_tile(in_features, group_size):
    for c in (2048, 1024, 512, 256):
        if (c <= in_features and in_features % c == 0
                and c % (2 * group_size) == 0
                and (c // 2) % 128 == 0
                and ((c // group_size) % 16 == 0 or c == in_features)):
            return c
    tk = in_features  # single reduction step over full K
    assert tk % (2 * group_size) == 0 and (tk // 2) % 128 == 0, (
        "in_features must be a multiple of 256 (and 2*group_size) for the "
        "nibble-packed kernel")
    return tk


def prepare_linear3bit_weights(weight_q3, weight_ranges, bias, shape, group_size):
    """One-time prep: transpose to (in, out), nibble-pack codes, bf16 scale/zero."""
    out_features, in_features = shape
    n_groups = weight_q3.shape[0]
    assert n_groups * group_size == out_features * in_features, (
        "padded quantized weights are not supported by the Pallas path")
    assert in_features % group_size == 0, "groups must lie within a weight row"

    tk = _pick_k_tile(in_features, group_size)
    half = tk // 2

    # (out, in) codes -> transposed (in, out) so the kernel computes x @ W_t.
    q_t = weight_q3.reshape(out_features, in_features).T.astype(jnp.uint8)

    # Nibble-pack per K tile: packed[r] = q[r] | (q[r + tk/2] << 4).
    qt = q_t.reshape(in_features // tk, tk, out_features)
    packed = (qt[:, :half, :] | (qt[:, half:, :] << 4)).astype(jnp.int8)
    packed = packed.reshape(in_features // 2, out_features)

    # Per-group scale/zero, transposed to (in//gs, out), stored bf16.
    gpr = in_features // group_size
    ranges_f32 = weight_ranges.astype(jnp.float32)                # (n_groups, 2)
    g_min = ranges_f32[:, 0].reshape(out_features, gpr)
    g_max = ranges_f32[:, 1].reshape(out_features, gpr)
    scale_t = ((g_max - g_min) * (1.0 / 7.0)).T.astype(jnp.bfloat16)
    zero_t = g_min.T.astype(jnp.bfloat16)

    bias_f32 = (bias.astype(jnp.float32) if bias is not None
                else jnp.zeros((out_features,), jnp.float32)).reshape(1, out_features)

    jax.block_until_ready((packed, scale_t, zero_t, bias_f32))
    return dict(packed=packed, scale=scale_t, zero=zero_t, bias=bias_f32,
                shape=shape, group_size=group_size, tk=tk)


# ----------------------------------------------------------------------------
# Forward (pallas_call only — no per-call weight reshuffling)
# ----------------------------------------------------------------------------
def _pick_tile(full, candidates):
    for c in candidates:
        if c <= full and full % c == 0:
            return c
    return full


def linear3bit_forward(x, prepared):
    out_features, in_features = prepared["shape"]
    group_size = prepared["group_size"]
    tk = prepared["tk"]
    B = x.shape[0]

    # Full batch in one tile when small: amortizes weight dequant over B.
    tm = B if B <= 256 else _pick_tile(B, (256, 128, 64, 32, 16, 8))
    tn = _pick_tile(out_features, (512, 256, 128))
    # v7x megacore: keep >= 2 parallel grid blocks when there is only one batch tile.
    if B // tm == 1 and out_features // tn < 2 and tn % 256 == 0:
        tn //= 2

    grid = (B // tm, out_features // tn, in_features // tk)

    x_bf16 = x.astype(jnp.bfloat16)   # halve x DMA; MXU consumes bf16 anyway

    kernel = functools.partial(
        linear3bit_kernel,
        group_size=group_size,
        dequant_dtype=_dequant_compute_dtype(),
    )

    return pl.pallas_call(
        kernel,
        out_shape=jax.ShapeDtypeStruct((B, out_features), jnp.float32),
        grid_spec=pltpu.PrefetchScalarGridSpec(
            num_scalar_prefetch=0,
            grid=grid,
            in_specs=[
                pl.BlockSpec((tm, tk), lambda i, j, k: (i, k)),                 # x (bf16)
                pl.BlockSpec((tk // 2, tn), lambda i, j, k: (k, j)),            # packed codes
                pl.BlockSpec((tk // group_size, tn), lambda i, j, k: (k, j)),   # scale (bf16)
                pl.BlockSpec((tk // group_size, tn), lambda i, j, k: (k, j)),   # zero (bf16)
                pl.BlockSpec((1, tn), lambda i, j, k: (0, j)),                  # bias (f32)
            ],
            out_specs=pl.BlockSpec((tm, tn), lambda i, j, k: (i, j)),
            scratch_shapes=[pltpu.VMEM((tm, tn), jnp.float32)],
        ),
        compiler_params=pltpu.CompilerParams(
            dimension_semantics=("parallel", "parallel", "arbitrary"),
            vmem_limit_bytes=40 * 1024 * 1024,   # safe on v7x's 64 MiB VMEM
        ),
    )(x_bf16, prepared["packed"], prepared["scale"], prepared["zero"],
      prepared["bias"])


# ----------------------------------------------------------------------------
# Pure-JAX reference (torch-semantics, f32 end-to-end)
# ----------------------------------------------------------------------------
def linear3bit_reference(x, weight_q3, weight_ranges, bias, shape, group_size):
    ranges = weight_ranges.astype(jnp.float32)
    x_min = ranges[..., 0:1]
    x_max = ranges[..., 1:2]
    x_norm = weight_q3.astype(jnp.float32) / 7
    w = (x_norm * (x_max - x_min) + x_min).reshape(-1)
    w = w[: shape[0] * shape[1]].reshape(shape)
    y = x.astype(jnp.float32) @ w.T
    if bias is not None:
        y = y + bias.astype(jnp.float32)
    return y


if __name__ == "__main__":
    batch = 16
    in_features = 1024
    out_features = 512
    group_size = 32

    key = jax.random.PRNGKey(0)
    k_w, k_x, k_b = jax.random.split(key, 3)

    # Deterministic synthetic full-precision weight -> quantized buffers
    # (what the load_state_dict pre-hook would have produced).
    weight_fp = jax.random.normal(k_w, (out_features * in_features,), jnp.float32)
    weight_q3, weight_ranges = block_quantize_3bit(weight_fp, group_size)

    bias = jax.random.normal(k_b, (out_features,), jnp.float32).astype(jnp.float16)
    x = jax.random.normal(k_x, (batch, in_features), jnp.float32)

    shape = (out_features, in_features)

    # Load-time weight prep (hoisted out of the forward path).
    prepared = prepare_linear3bit_weights(
        weight_q3, weight_ranges, bias, shape, group_size)

    y = linear3bit_forward(x, prepared)
    y = jax.block_until_ready(y)

    y_ref = linear3bit_reference(x, weight_q3, weight_ranges, bias, shape, group_size)
    assert y.shape == (batch, out_features)

    # Expected (by design, not a bug): bf16 x / bf16 MXU / bf16-stored scale&zero
    # vs the f32 reference gives ~1e-2 relative error; real packing/indexing bugs
    # would be O(1).
    rel_err = jnp.max(jnp.abs(y - y_ref)) / (jnp.max(jnp.abs(y_ref)) + 1e-6)
    assert rel_err < 3e-2, f"mismatch vs reference, rel_err={rel_err}"

    print("KERNEL_OK")
</pallas_src>

<mosaic_0001>
module attributes {stable_mosaic.version = 11 : i64} {
  func.func @linear3bit_kernel(%arg0: i32, %arg1: i32, %arg2: i32, %arg3: memref<16x1024xbf16, #tpu.memory_space<vmem>>, %arg4: memref<512x256xi8, #tpu.memory_space<vmem>>, %arg5: memref<32x256xbf16, #tpu.memory_space<vmem>>, %arg6: memref<32x256xbf16, #tpu.memory_space<vmem>>, %arg7: memref<1x256xf32, #tpu.memory_space<vmem>>, %arg8: memref<16x256xf32, #tpu.memory_space<vmem>>, %arg9: memref<16x256xf32, #tpu.memory_space<vmem>>) attributes {dimension_semantics = [#tpu.dimension_semantics<parallel>, #tpu.dimension_semantics<parallel>, #tpu.dimension_semantics<arbitrary>], iteration_bounds = array<i64: 1, 2, 1>, scalar_prefetch = 0 : i64, scratch_operands = 1 : i64, tpu.core_type = #tpu.core_type<tc>, window_params = [{transform_indices = @transform_0, window_bounds = array<i64: 16, 1024>}, {transform_indices = @transform_1, window_bounds = array<i64: 512, 256>}, {transform_indices = @transform_2, window_bounds = array<i64: 32, 256>}, {transform_indices = @transform_3, window_bounds = array<i64: 32, 256>}, {transform_indices = @transform_4, window_bounds = array<i64: 1, 256>}, {transform_indices = @transform_5, window_bounds = array<i64: 16, 256>}]} {
    %c0_i32 = arith.constant 0 : i32
    %0 = arith.cmpi eq, %arg2, %c0_i32 : i32
    %1 = arith.extui %0 : i1 to i32
    %c0_i32_0 = arith.constant 0 : i32
    %2 = arith.cmpi ne, %1, %c0_i32_0 : i32
    scf.if %2 {
      %cst_20 = arith.constant 0.000000e+00 : f32
      %53 = vector.broadcast %cst_20 : f32 to vector<16x256xf32>
      %c0_21 = arith.constant 0 : index
      %c0_22 = arith.constant 0 : index
      %54 = vector.load %arg9[%c0_21, %c0_22] : memref<16x256xf32, #tpu.memory_space<vmem>>, vector<16x256xf32>
      tpu.vector_store %arg9[%c0_21, %c0_22], %53 {strides = array<i32>} : memref<16x256xf32, #tpu.memory_space<vmem>>, vector<16x256xf32>,
    } else {
    }
    %c0 = arith.constant 0 : index
    %c0_1 = arith.constant 0 : index
    %3 = vector.load %arg4[%c0, %c0_1] : memref<512x256xi8, #tpu.memory_space<vmem>>, vector<512x256xi8>
    %4 = arith.extsi %3 : vector<512x256xi8> to vector<512x256xi32>
    %c7_i32 = arith.constant 7 : i32
    %5 = vector.broadcast %c7_i32 : i32 to vector<512x256xi32>
    %6 = arith.andi %4, %5 : vector<512x256xi32>
    %7 = arith.sitofp %6 : vector<512x256xi32> to vector<512x256xf32>
    %c4_i32 = arith.constant 4 : i32
    %8 = vector.broadcast %c4_i32 : i32 to vector<512x256xi32>
    %9 = arith.shrsi %4, %8 : vector<512x256xi32>
    %c7_i32_2 = arith.constant 7 : i32
    %10 = vector.broadcast %c7_i32_2 : i32 to vector<512x256xi32>
    %11 = arith.andi %9, %10 : vector<512x256xi32>
    %12 = arith.sitofp %11 : vector<512x256xi32> to vector<512x256xf32>
    %c0_3 = arith.constant 0 : index
    %c0_4 = arith.constant 0 : index
    %13 = vector.load %arg5[%c0_3, %c0_4] : memref<32x256xbf16, #tpu.memory_space<vmem>>, vector<32x256xbf16>
    %14 = arith.extf %13 : vector<32x256xbf16> to vector<32x256xf32>
    %c0_5 = arith.constant 0 : index
    %c0_6 = arith.constant 0 : index
    %15 = vector.load %arg6[%c0_5, %c0_6] : memref<32x256xbf16, #tpu.memory_space<vmem>>, vector<32x256xbf16>
    %16 = arith.extf %15 : vector<32x256xbf16> to vector<32x256xf32>
    %17 = vector.extract_strided_slice %14 {offsets = [0, 0], sizes = [16, 256], strides = [1, 1]} : vector<32x256xf32> to vector<16x256xf32>
    %18 = vector.extract_strided_slice %16 {offsets = [0, 0], sizes = [16, 256], strides = [1, 1]} : vector<32x256xf32> to vector<16x256xf32>
    %19 = vector.shape_cast %7 : vector<512x256xf32> to vector<16x32x256xf32>
    %20 = vector.shape_cast %17 : vector<16x256xf32> to vector<16x1x256xf32>
    %21 = vector.broadcast %20 : vector<16x1x256xf32> to vector<16x32x256xf32>
    %22 = arith.mulf %19, %21 : vector<16x32x256xf32>
    %23 = vector.shape_cast %18 : vector<16x256xf32> to vector<16x1x256xf32>
    %24 = vector.broadcast %23 : vector<16x1x256xf32> to vector<16x32x256xf32>
    %25 = arith.addf %22, %24 : vector<16x32x256xf32>
    %26 = vector.shape_cast %25 : vector<16x32x256xf32> to vector<512x256xf32>
    %27 = arith.truncf %26 : vector<512x256xf32> to vector<512x256xbf16>
    %28 = vector.extract_strided_slice %14 {offsets = [16, 0], sizes = [16, 256], strides = [1, 1]} : vector<32x256xf32> to vector<16x256xf32>
    %29 = vector.extract_strided_slice %16 {offsets = [16, 0], sizes = [16, 256], strides = [1, 1]} : vector<32x256xf32> to vector<16x256xf32>
    %30 = vector.shape_cast %12 : vector<512x256xf32> to vector<16x32x256xf32>
    %31 = vector.shape_cast %28 : vector<16x256xf32> to vector<16x1x256xf32>
    %32 = vector.broadcast %31 : vector<16x1x256xf32> to vector<16x32x256xf32>
    %33 = arith.mulf %30, %32 : vector<16x32x256xf32>
    %34 = vector.shape_cast %29 : vector<16x256xf32> to vector<16x1x256xf32>
    %35 = vector.broadcast %34 : vector<16x1x256xf32> to vector<16x32x256xf32>
    %36 = arith.addf %33, %35 : vector<16x32x256xf32>
    %37 = vector.shape_cast %36 : vector<16x32x256xf32> to vector<512x256xf32>
    %38 = arith.truncf %37 : vector<512x256xf32> to vector<512x256xbf16>
    %c0_7 = arith.constant 0 : index
    %c0_8 = arith.constant 0 : index
    %39 = vector.load %arg3[%c0_7, %c0_8] : memref<16x1024xbf16, #tpu.memory_space<vmem>>, vector<16x1024xbf16>
    %c0_9 = arith.constant 0 : index
    %c0_10 = arith.constant 0 : index
    %40 = vector.load %arg9[%c0_9, %c0_10] : memref<16x256xf32, #tpu.memory_space<vmem>>, vector<16x256xf32>
    %41 = vector.extract_strided_slice %39 {offsets = [0, 0], sizes = [16, 512], strides = [1, 1]} : vector<16x1024xbf16> to vector<16x512xbf16>
    %cst = arith.constant dense<0.000000e+00> : vector<16x256xf32>
    %42 = tpu.matmul %41, %27, %cst {dimension_numbers = #tpu.dot_dimension_numbers<[1], [0], [0], [1], [0, 0, 1, 1], [], []>} : vector<16x512xbf16>, vector<512x256xbf16>, vector<16x256xf32> -> vector<16x256xf32>
    %43 = arith.addf %40, %42 : vector<16x256xf32>
    %c0_11 = arith.constant 0 : index
    %c0_12 = arith.constant 0 : index
    %44 = vector.load %arg9[%c0_11, %c0_12] : memref<16x256xf32, #tpu.memory_space<vmem>>, vector<16x256xf32>
    tpu.vector_store %arg9[%c0_11, %c0_12], %43 {strides = array<i32>} : memref<16x256xf32, #tpu.memory_space<vmem>>, vector<16x256xf32>,
    %c0_13 = arith.constant 0 : index
    %c0_14 = arith.constant 0 : index
    %45 = vector.load %arg9[%c0_13, %c0_14] : memref<16x256xf32, #tpu.memory_space<vmem>>, vector<16x256xf32>
    %46 = vector.extract_strided_slice %39 {offsets = [0, 512], sizes = [16, 512], strides = [1, 1]} : vector<16x1024xbf16> to vector<16x512xbf16>
    %cst_15 = arith.constant dense<0.000000e+00> : vector<16x256xf32>
    %47 = tpu.matmul %46, %38, %cst_15 {dimension_numbers = #tpu.dot_dimension_numbers<[1], [0], [0], [1], [0, 0, 1, 1], [], []>} : vector<16x512xbf16>, vector<512x256xbf16>, vector<16x256xf32> -> vector<16x256xf32>
    %48 = arith.addf %45, %47 : vector<16x256xf32>
    %c0_16 = arith.constant 0 : index
    %c0_17 = arith.constant 0 : index
    %49 = vector.load %arg9[%c0_16, %c0_17] : memref<16x256xf32, #tpu.memory_space<vmem>>, vector<16x256xf32>
    tpu.vector_store %arg9[%c0_16, %c0_17], %48 {strides = array<i32>} : memref<16x256xf32, #tpu.memory_space<vmem>>, vector<16x256xf32>,
    %c0_i32_18 = arith.constant 0 : i32
    %50 = arith.cmpi eq, %arg2, %c0_i32_18 : i32
    %51 = arith.extui %50 : i1 to i32
    %c0_i32_19 = arith.constant 0 : i32
    %52 = arith.cmpi ne, %51, %c0_i32_19 : i32
    scf.if %52 {
      %c0_20 = arith.constant 0 : index
      %c0_21 = arith.constant 0 : index
      %53 = vector.load %arg9[%c0_20, %c0_21] : memref<16x256xf32, #tpu.memory_space<vmem>>, vector<16x256xf32>
      %c0_22 = arith.constant 0 : index
      %c0_23 = arith.constant 0 : index
      %54 = vector.load %arg7[%c0_22, %c0_23] : memref<1x256xf32, #tpu.memory_space<vmem>>, vector<1x256xf32>
      %55 = vector.broadcast %54 : vector<1x256xf32> to vector<16x256xf32>
      %56 = arith.addf %53, %55 : vector<16x256xf32>
      %c0_24 = arith.constant 0 : index
      %c0_25 = arith.constant 0 : index
      %57 = vector.load %arg8[%c0_24, %c0_25] : memref<16x256xf32, #tpu.memory_space<vmem>>, vector<16x256xf32>
      tpu.vector_store %arg8[%c0_24, %c0_25], %56 {strides = array<i32>} : memref<16x256xf32, #tpu.memory_space<vmem>>, vector<16x256xf32>,
    } else {
    }
    return
  }
  func.func @transform_0(%arg0: i32, %arg1: i32, %arg2: i32) -> (i32, i32) {
    %c0_i32 = arith.constant 0 : i32
    return %arg0, %arg2 : i32, i32
  }
  func.func @transform_1(%arg0: i32, %arg1: i32, %arg2: i32) -> (i32, i32) {
    %c0_i32 = arith.constant 0 : i32
    return %arg2, %arg1 : i32, i32
  }
  func.func @transform_2(%arg0: i32, %arg1: i32, %arg2: i32) -> (i32, i32) {
    %c0_i32 = arith.constant 0 : i32
    return %arg2, %arg1 : i32, i32
  }
  func.func @transform_3(%arg0: i32, %arg1: i32, %arg2: i32) -> (i32, i32) {
    %c0_i32 = arith.constant 0 : i32
    return %arg2, %arg1 : i32, i32
  }
  func.func @transform_4(%arg0: i32, %arg1: i32, %arg2: i32) -> (i32, i32) {
    %c0_i32 = arith.constant 0 : i32
    %c0_i32_0 = arith.constant 0 : i32
    return %c0_i32, %arg1 : i32, i32
  }
  func.func @transform_5(%arg0: i32, %arg1: i32, %arg2: i32) -> (i32, i32) {
    %c0_i32 = arith.constant 0 : i32
    return %arg0, %arg1 : i32, i32
  }
}

</mosaic_0001>

<llo_original>
// kernel: tpu_custom_call.1
$region0: #{tpu_custom_call.1}
  #allocation0 [shape = 'u32[]', space=smem, size = 0x4, offset = 0x4, fixed_abs, tag = 'smem constant byte address 0x4 - core index']
  #allocation1 [shape = 'u32[144,128]{1,0:T(1,128)}', space=vmem, size = 0x12000, scoped, tag = 'internal scratch']
  #allocation2 [shape = 'f32[16,256]{1,0:T(8,128)}', space=vmem, size = 0x4000, scoped, tag = 'scratch operand']
  %s0 = inlined_call_operand.hbm [shape: bf16[16,1024], index: 0, kind: input, shape index: {}]
  %s1 = inlined_call_operand.hbm [shape: s8[512,512], index: 1, kind: input, shape index: {}]
  %s2 = inlined_call_operand.hbm [shape: bf16[32,512], index: 2, kind: input, shape index: {}]
  %s3 = inlined_call_operand.hbm [shape: bf16[32,512], index: 3, kind: input, shape index: {}]
  %s4 = inlined_call_operand.vmem [shape: f32[1,512], index: 4, kind: input, shape index: {}]
  %s5 = inlined_call_operand.hbm [shape: f32[16,512], index: 5, kind: output, shape index: {}]
  %s6 = sld [smem:[#allocation0]]
  $region77: #{tpu_custom_call.1} parent=0
    _
  %s8 = ssub.s32 1, %s6
  %s9 = scalar_select 0, %s8, %s6
  $region1: #{tpu_custom_call.1} parent=0
    #allocation3 [shape = 'u8[32768]{0}', space=vmem, size = 0x8000, scoped, tag = 'input window, operand 0, single buffered']
    #allocation4 [shape = 's32[2]{0}', space=sflag, size = 0x8, scoped, tag = 'scoped memory for tpu_custom_call.1']
    #allocation5 [shape = 's32[2]{0}', space=sflag, size = 0x8, scoped, tag = 'scoped memory for tpu_custom_call.1']
    #allocation6 [shape = 'u8[262144]{0}', space=vmem, size = 0x40000, scoped, tag = 'input window, operand 1']
    #allocation7 [shape = 's32[2]{0}', space=sflag, size = 0x8, scoped, tag = 'scoped memory for tpu_custom_call.1']
    #allocation8 [shape = 'u8[32768]{0}', space=vmem, size = 0x8000, scoped, tag = 'input window, operand 2']
    #allocation9 [shape = 'u8[32768]{0}', space=vmem, size = 0x8000, scoped, tag = 'input window, operand 3']
    #allocation10 [shape = 's32[2]{0}', space=sflag, size = 0x8, scoped, tag = 'scoped memory for tpu_custom_call.1']
    #allocation11 [shape = 'u8[32768]{0}', space=vmem, size = 0x8000, scoped, tag = 'output window, operand 0']
    %10 = vsyncpa [#allocation4], 0
    %11 = vsyncpa [#allocation7], 0
    %s12 = scalar_lea.sflag [#allocation7], 1
    %13 = vsyncpa %s12, 0
    %14 = vsyncpa [#allocation10], 0
    %s15 = scalar_lea.sflag [#allocation10], 1
    %16 = vsyncpa %s15, 0
    %17 = vsyncpa [#allocation5], 0
    %s18 = scalar_lea.sflag [#allocation5], 1
    %19 = vsyncpa %s18, 0
    loop: start=0, step=1, limit=4
    $region2: #{tpu_custom_call.1} parent=1 // loop_pre_header
      _
    $region3: #{tpu_custom_call.1} parent=1 // loop_header
      %s21 = sphi 0, %s25
      %p22 = scmp.ge.s32.totalorder %s21, 4
      %s28 = sphi 0, %s47
      %s29 = sphi 0, %s43
      %s30 = sphi 0, %s39
      %s31 = sphi 0, %s28
      %s32 = sphi 0, %s29
      %s33 = sphi 0, %s30
      %s34 = sphi 0, %s31
      %s35 = sphi 0, %s32
      %s36 = sphi 0, %s33
      %s52 = sphi 0, %s54
      %s55 = sphi 0, %s52
      %s56 = sphi 0, %s55
      %s72 = sphi 0, %s56
      %s80 = sphi 0, %s82
      %s83 = sphi 0, %s80
      %s84 = sphi 0, %s83
      %s100 = sphi 0, %s84
      %s108 = sphi 0, %s110
      %s111 = sphi 0, %s108
      %s112 = sphi 0, %s111
      %s128 = sphi 0, %s112
      %s136 = sphi 0, %s138
      %s139 = sphi 0, %s136
      %s140 = sphi 0, %s139
      %s156 = sphi 0, %s140
      %s162 = sphi 0, %s164
      %s165 = sphi 0, %s162
      %s166 = sphi 0, %s165
      %s182 = sphi 0, %s166
      %s190 = sphi 0, %s192
      %s193 = sphi 0, %s190
      %s194 = sphi 0, %s193
      %s210 = sphi 0, %s194
    $region4: #{tpu_custom_call.1} parent=1 // loop_header_branch
      %24 = sbr.rel (%p22) target = $region8
    $region5: #{tpu_custom_call.1} parent=1 // loop_body
      %s26 = ssub.s32 %s21, 1
      %s27 = ssub.s32 %s21, 2
      %s37 = sadd.s32 1, %s30
      %p38 = scmp.ge.s32.totalorder %s37, 1
      %s39 = scalar_select %p38, 0, %s37
      %s40 = sadd.s32 1, %s29
      %s41 = scalar_select %p38, %s40, %s29
      %p42 = scmp.ge.s32.totalorder %s41, 2
      %s43 = scalar_select %p42, 0, %s41
      %s44 = sadd.s32 1, %s28
      %s45 = scalar_select %p42, %s44, %s28
      %p46 = scmp.ge.s32.totalorder %s45, 1
      %s47 = scalar_select %p46, 0, %s45
      %s48 = ssub.s32 %s28, %s47
      %s49 = ssub.s32 %s30, %s39
      %s50 = sor.u32 %s48, %s49
      %p51 = scmp.eq.s32.totalorder %s50, 0
      %s53 = sadd.s32 %s52, 1
      %s54 = scalar_select %p51, %s52, %s53
      %p57 = pneg %p51
      %p58 = scmp.eq.s32.totalorder %s21, 1
      %p59 = por %p57, %p58
      %p60 = scmp.ne.s32.totalorder %s52, %s55
      %p61 = scmp.eq.s32.totalorder %s21, 0
      %p62 = por %p60, %p61
      %p63 = scmp.ne.s32.totalorder %s52, %s55
      %p64 = scmp.eq.s32.totalorder %s26, 1
      %p65 = por %p63, %p64
      %p66 = scmp.ne.s32.totalorder %s55, %s56
      %p67 = scmp.eq.s32.totalorder %s26, 0
      %p68 = por %p66, %p67
      %p69 = scmp.ne.s32.totalorder %s55, %s56
      %p70 = scmp.eq.s32.totalorder %s27, 1
      %p71 = por %p69, %p70
      %p73 = scmp.ne.s32.totalorder %s56, %s72
      %p74 = scmp.eq.s32.totalorder %s27, 0
      %p75 = por %p73, %p74
      %s76 = ssub.s32 %s30, %s39
      %s77 = ssub.s32 %s29, %s43
      %s78 = sor.u32 %s76, %s77
      %p79 = scmp.eq.s32.totalorder %s78, 0
      %s81 = sadd.s32 %s80, 1
      %s82 = scalar_select %p79, %s80, %s81
      %p85 = pneg %p79
      %p86 = scmp.eq.s32.totalorder %s21, 1
      %p87 = por %p85, %p86
      %p88 = scmp.ne.s32.totalorder %s80, %s83
      %p89 = scmp.eq.s32.totalorder %s21, 0
      %p90 = por %p88, %p89
      %p91 = scmp.ne.s32.totalorder %s80, %s83
      %p92 = scmp.eq.s32.totalorder %s26, 1
      %p93 = por %p91, %p92
      %p94 = scmp.ne.s32.totalorder %s83, %s84
      %p95 = scmp.eq.s32.totalorder %s26, 0
      %p96 = por %p94, %p95
      %p97 = scmp.ne.s32.totalorder %s83, %s84
      %p98 = scmp.eq.s32.totalorder %s27, 1
      %p99 = por %p97, %p98
      %p101 = scmp.ne.s32.totalorder %s84, %s100
      %p102 = scmp.eq.s32.totalorder %s27, 0
      %p103 = por %p101, %p102
      %s104 = ssub.s32 %s30, %s39
      %s105 = ssub.s32 %s29, %s43
      %s106 = sor.u32 %s104, %s105
      %p107 = scmp.eq.s32.totalorder %s106, 0
      %s109 = sadd.s32 %s108, 1
      %s110 = scalar_select %p107, %s108, %s109
      %p113 = pneg %p107
      %p114 = scmp.eq.s32.totalorder %s21, 1
      %p115 = por %p113, %p114
      %p116 = scmp.ne.s32.totalorder %s108, %s111
      %p117 = scmp.eq.s32.totalorder %s21, 0
      %p118 = por %p116, %p117
      %p119 = scmp.ne.s32.totalorder %s108, %s111
      %p120 = scmp.eq.s32.totalorder %s26, 1
      %p121 = por %p119, %p120
      %p122 = scmp.ne.s32.totalorder %s111, %s112
      %p123 = scmp.eq.s32.totalorder %s26, 0
      %p124 = por %p122, %p123
      %p125 = scmp.ne.s32.totalorder %s111, %s112
      %p126 = scmp.eq.s32.totalorder %s27, 1
      %p127 = por %p125, %p126
      %p129 = scmp.ne.s32.totalorder %s112, %s128
      %p130 = scmp.eq.s32.totalorder %s27, 0
      %p131 = por %p129, %p130
      %s132 = ssub.s32 %s30, %s39
      %s133 = ssub.s32 %s29, %s43
      %s134 = sor.u32 %s132, %s133
      %p135 = scmp.eq.s32.totalorder %s134, 0
      %s137 = sadd.s32 %s136, 1
      %s138 = scalar_select %p135, %s136, %s137
      %p141 = pneg %p135
      %p142 = scmp.eq.s32.totalorder %s21, 1
      %p143 = por %p141, %p142
      %p144 = scmp.ne.s32.totalorder %s136, %s139
      %p145 = scmp.eq.s32.totalorder %s21, 0
      %p146 = por %p144, %p145
      %p147 = scmp.ne.s32.totalorder %s136, %s139
      %p148 = scmp.eq.s32.totalorder %s26, 1
      %p149 = por %p147, %p148
      %p150 = scmp.ne.s32.totalorder %s139, %s140
      %p151 = scmp.eq.s32.totalorder %s26, 0
      %p152 = por %p150, %p151
      %p153 = scmp.ne.s32.totalorder %s139, %s140
      %p154 = scmp.eq.s32.totalorder %s27, 1
      %p155 = por %p153, %p154
      %p157 = scmp.ne.s32.totalorder %s140, %s156
      %p158 = scmp.eq.s32.totalorder %s27, 0
      %p159 = por %p157, %p158
      %s160 = ssub.s32 %s29, %s43
      %p161 = scmp.eq.s32.totalorder %s160, 0
      %s163 = sadd.s32 %s162, 1
      %s164 = scalar_select %p161, %s162, %s163
      %p167 = pneg %p161
      %p168 = scmp.eq.s32.totalorder %s21, 1
      %p169 = por %p167, %p168
      %p170 = scmp.ne.s32.totalorder %s162, %s165
      %p171 = scmp.eq.s32.totalorder %s21, 0
      %p172 = por %p170, %p171
      %p173 = scmp.ne.s32.totalorder %s162, %s165
      %p174 = scmp.eq.s32.totalorder %s26, 1
      %p175 = por %p173, %p174
      %p176 = scmp.ne.s32.totalorder %s165, %s166
      %p177 = scmp.eq.s32.totalorder %s26, 0
      %p178 = por %p176, %p177
      %p179 = scmp.ne.s32.totalorder %s165, %s166
      %p180 = scmp.eq.s32.totalorder %s27, 1
      %p181 = por %p179, %p180
      %p183 = scmp.ne.s32.totalorder %s166, %s182
      %p184 = scmp.eq.s32.totalorder %s27, 0
      %p185 = por %p183, %p184
      %s186 = ssub.s32 %s28, %s47
      %s187 = ssub.s32 %s29, %s43
      %s188 = sor.u32 %s186, %s187
      %p189 = scmp.eq.s32.totalorder %s188, 0
      %s191 = sadd.s32 %s190, 1
      %s192 = scalar_select %p189, %s190, %s191
      %p195 = pneg %p189
      %p196 = scmp.eq.s32.totalorder %s21, 1
      %p197 = por %p195, %p196
      %p198 = scmp.ne.s32.totalorder %s190, %s193
      %p199 = scmp.eq.s32.totalorder %s21, 0
      %p200 = por %p198, %p199
      %p201 = scmp.ne.s32.totalorder %s190, %s193
      %p202 = scmp.eq.s32.totalorder %s26, 1
      %p203 = por %p201, %p202
      %p204 = scmp.ne.s32.totalorder %s193, %s194
      %p205 = scmp.eq.s32.totalorder %s26, 0
      %p206 = por %p204, %p205
      %p207 = scmp.ne.s32.totalorder %s193, %s194
      %p208 = scmp.eq.s32.totalorder %s27, 1
      %p209 = por %p207, %p208
      %p211 = scmp.ne.s32.totalorder %s194, %s210
      %p212 = scmp.eq.s32.totalorder %s27, 0
      %p213 = por %p211, %p212
      %p214 = scmp.le.s32.totalorder 1, %s21
      %p215 = scmp.lt.s32.totalorder %s21, 3
      %p216 = pnand %p214, %p215
      %p217 = pneg %p216
      // Predicated region
      $region9: #{tpu_custom_call.1} parent=5 // pred_check
        _
      $region10: #{tpu_custom_call.1} parent=5 // pred_check_branch
        %219 = sbr.rel (%p216) target = $region12
      $region11: #{tpu_custom_call.1} parent=5 // pred_region
        %s220 = ssub.s32 %s21, 1
        // Predicated region
        $region13: #{tpu_custom_call.1} parent=11 // pred_check
          %p221 = pneg %p68
        $region14: #{tpu_custom_call.1} parent=11 // pred_check_branch
          %223 = sbr.rel (%p221) target = $region16
        $region15: #{tpu_custom_call.1} parent=11 // pred_region
          %s224 = smul.u32 2, %s31
          %s225 = smul.u32 8, %s33
          %s227 = ssub.s32 1024, 1024
          %228 = vsyncadd [#allocation4], %s227
          %s229 = smul.addr %s224, 8
          %s230 = sadd.s32 %s225, %s229
          %s231 = smul.addr %s230, 64
          %s232 = scalar_lea.hbm %s0, %s231
          %s233 = sshll.u32 [#allocation3], 4
          %s234 = int_to_ptr.vmem [resolvable:$true] %s233
          %239 = dma.hbm_to_vmem [thread:$0]  %s232, 1024, %s234, [#allocation4], 512, 512, 32
        $region16: #{tpu_custom_call.1} parent=11 // pred_fallthru
          _
      $region12: #{tpu_custom_call.1} parent=5 // pred_fallthru
        _
      %p240 = scmp.lt.s32.totalorder %s21, 2
      // Predicated region
      $region17: #{tpu_custom_call.1} parent=5 // pred_check
        %p241 = pneg %p240
      $region18: #{tpu_custom_call.1} parent=5 // pred_check_branch
        %243 = sbr.rel (%p241) target = $region20
      $region19: #{tpu_custom_call.1} parent=5 // pred_region
        // Predicated region
        $region21: #{tpu_custom_call.1} parent=19 // pred_check
          %p244 = pneg %p90
        $region22: #{tpu_custom_call.1} parent=19 // pred_check_branch
          %246 = sbr.rel (%p244) target = $region24
        $region23: #{tpu_custom_call.1} parent=19 // pred_region
          %s247 = sand.u32 %s21, 1
          %s248 = scalar_lea.sflag [#allocation7], %s247
          %s249 = sand.u32 %s80, 1
          %s250 = smul.addr %s249, 256
          %s251 = scalar_lea.vmem [#allocation6], %s250
          %s252 = smul.u32 16, %s30
          %s253 = smul.u32 2, %s29
          %s255 = ssub.s32 4096, 4096
          %256 = vsyncadd %s248, %s255
          %s257 = smul.addr %s252, 4
          %s258 = sadd.s32 %s253, %s257
          %s259 = smul.addr %s258, 128
          %s260 = scalar_lea.hbm %s1, %s259
          %s261 = sshll.u32 %s251, 4
          %s262 = int_to_ptr.vmem [resolvable:$true] %s261
          %267 = dma.hbm_to_vmem [thread:$0]  %s260, 4096, %s262, %s248, 512, 256, 16
        $region24: #{tpu_custom_call.1} parent=19 // pred_fallthru
          _
        // Predicated region
        $region25: #{tpu_custom_call.1} parent=19 // pred_check
          %p268 = pneg %p118
        $region26: #{tpu_custom_call.1} parent=19 // pred_check_branch
          %270 = sbr.rel (%p268) target = $region28
        $region27: #{tpu_custom_call.1} parent=19 // pred_region
          %s271 = sand.u32 %s21, 1
          %s272 = scalar_lea.sflag [#allocation7], %s271
          %s273 = sand.u32 %s108, 1
          %s274 = smul.addr %s273, 32
          %s275 = scalar_lea.vmem [#allocation8], %s274
          %s276 = smul.u32 4, %s30
          %s277 = smul.u32 2, %s29
          %s279 = ssub.s32 512, 512
          %280 = vsyncadd %s272, %s279
          %s281 = smul.addr %s276, 4
          %s282 = sadd.s32 %s277, %s281
          %s283 = smul.addr %s282, 64
          %s284 = scalar_lea.hbm %s2, %s283
          %s285 = sshll.u32 %s275, 4
          %s286 = int_to_ptr.vmem [resolvable:$true] %s285
          %291 = dma.hbm_to_vmem [thread:$0]  %s284, 512, %s286, %s272, 256, 128, 8
        $region28: #{tpu_custom_call.1} parent=19 // pred_fallthru
          _
        // Predicated region
        $region29: #{tpu_custom_call.1} parent=19 // pred_check
          %p292 = pneg %p146
        $region30: #{tpu_custom_call.1} parent=19 // pred_check_branch
          %294 = sbr.rel (%p292) target = $region32
        $region31: #{tpu_custom_call.1} parent=19 // pred_region
          %s295 = sand.u32 %s136, 1
          %s296 = scalar_lea.sflag [#allocation10], %s295
          %s297 = sand.u32 %s136, 1
          %s298 = smul.addr %s297, 32
          %s299 = scalar_lea.vmem [#allocation9], %s298
          %s300 = smul.u32 4, %s30
          %s301 = smul.u32 2, %s29
          %s303 = ssub.s32 512, 512
          %304 = vsyncadd %s296, %s303
          %s305 = smul.addr %s300, 4
          %s306 = sadd.s32 %s301, %s305
          %s307 = smul.addr %s306, 64
          %s308 = scalar_lea.hbm %s3, %s307
          %s309 = sshll.u32 %s299, 4
          %s310 = int_to_ptr.vmem [resolvable:$true] %s309
          %315 = dma.hbm_to_vmem [thread:$0]  %s308, 512, %s310, %s296, 256, 128, 8
        $region32: #{tpu_custom_call.1} parent=19 // pred_fallthru
          _
        // Predicated region
        $region33: #{tpu_custom_call.1} parent=19 // pred_check
          %p316 = pneg %p172
        $region34: #{tpu_custom_call.1} parent=19 // pred_check_branch
          %318 = sbr.rel (%p316) target = $region36
        $region35: #{tpu_custom_call.1} parent=19 // pred_region
          %s319 = smul.u32 2, %s29
          %p320 = scmp.lt.s32.totalorder %s319, 3
          %s321 = scalar_select %p320, %s319, 3
          %s322 = scalar_lea.vmem %s4, %s321
          %s323 = smul.u32 2, %s29
        $region36: #{tpu_custom_call.1} parent=19 // pred_fallthru
          _
      $region20: #{tpu_custom_call.1} parent=5 // pred_fallthru
        _
      %p324 = scmp.le.s32.totalorder 1, %s21
      %p325 = scmp.lt.s32.totalorder %s21, 3
      %p326 = pnand %p324, %p325
      %p327 = pneg %p326
      // Predicated region
      $region37: #{tpu_custom_call.1} parent=5 // pred_check
        _
      $region38: #{tpu_custom_call.1} parent=5 // pred_check_branch
        %329 = sbr.rel (%p326) target = $region40
      $region39: #{tpu_custom_call.1} parent=5 // pred_region
        %s330 = ssub.s32 %s21, 1
        // Predicated region
        $region41: #{tpu_custom_call.1} parent=39 // pred_check
          %p331 = pneg %p68
        $region42: #{tpu_custom_call.1} parent=39 // pred_check_branch
          %333 = sbr.rel (%p331) target = $region44
        $region43: #{tpu_custom_call.1} parent=39 // pred_region
          %334 = dma.done [#allocation4], 1024
        $region44: #{tpu_custom_call.1} parent=39 // pred_fallthru
          _
        %s335 = sand.u32 %s26, 1
        %s336 = scalar_lea.sflag [#allocation7], %s335
        %s337 = sand.u32 %s83, 1
        %s338 = smul.addr %s337, 256
        %s339 = scalar_lea.vmem [#allocation6], %s338
        // Predicated region
        $region45: #{tpu_custom_call.1} parent=39 // pred_check
          %p340 = pneg %p96
        $region46: #{tpu_custom_call.1} parent=39 // pred_check_branch
          %342 = sbr.rel (%p340) target = $region48
        $region47: #{tpu_custom_call.1} parent=39 // pred_region
          %343 = dma.done %s336, 4096
        $region48: #{tpu_custom_call.1} parent=39 // pred_fallthru
          _
        %s344 = sand.u32 %s26, 1
        %s345 = scalar_lea.sflag [#allocation7], %s344
        %s346 = sand.u32 %s111, 1
        %s347 = smul.addr %s346, 32
        %s348 = scalar_lea.vmem [#allocation8], %s347
        // Predicated region
        $region49: #{tpu_custom_call.1} parent=39 // pred_check
          %p349 = pneg %p124
        $region50: #{tpu_custom_call.1} parent=39 // pred_check_branch
          %351 = sbr.rel (%p349) target = $region52
        $region51: #{tpu_custom_call.1} parent=39 // pred_region
          %352 = dma.done %s345, 512
        $region52: #{tpu_custom_call.1} parent=39 // pred_fallthru
          _
        %s353 = sand.u32 %s139, 1
        %s354 = scalar_lea.sflag [#allocation10], %s353
        %s355 = sand.u32 %s139, 1
        %s356 = smul.addr %s355, 32
        %s357 = scalar_lea.vmem [#allocation9], %s356
        // Predicated region
        $region53: #{tpu_custom_call.1} parent=39 // pred_check
          %p358 = pneg %p152
        $region54: #{tpu_custom_call.1} parent=39 // pred_check_branch
          %360 = sbr.rel (%p358) target = $region56
        $region55: #{tpu_custom_call.1} parent=39 // pred_region
          %361 = dma.done %s354, 512
        $region56: #{tpu_custom_call.1} parent=39 // pred_fallthru
          _
        %p362 = pneg %p68
        %p363 = pneg %p65
        %s364 = sand.u32 %s26, 1
        %s365 = scalar_lea.sflag [#allocation7], %s364
        %s366 = sand.u32 %s83, 1
        %s367 = smul.addr %s366, 256
        %s368 = scalar_lea.vmem [#allocation6], %s367
        %p369 = pneg %p96
        %p370 = pneg %p93
        %s371 = sand.u32 %s26, 1
        %s372 = scalar_lea.sflag [#allocation7], %s371
        %s373 = sand.u32 %s111, 1
        %s374 = smul.addr %s373, 32
        %s375 = scalar_lea.vmem [#allocation8], %s374
        %p376 = pneg %p124
        %p377 = pneg %p121
        %s378 = sand.u32 %s139, 1
        %s379 = scalar_lea.sflag [#allocation10], %s378
        %s380 = sand.u32 %s139, 1
        %s381 = smul.addr %s380, 32
        %s382 = scalar_lea.vmem [#allocation9], %s381
        %p383 = pneg %p152
        %p384 = pneg %p149
        %s385 = smul.u32 2, %s32
        %p386 = scmp.lt.s32.totalorder %s385, 3
        %s387 = scalar_select %p386, %s385, 3
        %s388 = scalar_lea.vmem %s4, %s387
        %p389 = pneg %p178
        %p390 = pneg %p175
        %p391 = pneg %p206
        %p392 = pneg %p203
        %s393 = sand.u32 %s193, 1
        %s394 = scalar_lea.sflag [#allocation5], %s393
        %s395 = sand.u32 %s193, 1
        %s396 = smul.addr %s395, 32
        %s397 = scalar_lea.vmem [#allocation11], %s396
        %s398 = smul.u32 2, %s31
        %s399 = smul.u32 8, %s33
        %s400 = smul.u32 16, %s33
        %s401 = smul.u32 2, %s32
        %s402 = smul.u32 4, %s33
        %s403 = smul.u32 2, %s32
        %s404 = smul.u32 4, %s33
        %s405 = smul.u32 2, %s32
        %s406 = smul.u32 2, %s32
        %p407 = scmp.lt.s32.totalorder %s406, 3
        %s408 = scalar_select %p407, %s406, 3
        %s409 = scalar_lea.vmem %s4, %s408
        %s410 = smul.u32 2, %s32
        %s411 = smul.u32 2, %s31
        %s412 = smul.u32 2, %s32
        %p413 = scmp.eq.s32.totalorder %s33, 0
        // Predicated region
        $region57: #{tpu_custom_call.1} parent=39 // pred_check
          %p414 = pneg %p413
        $region58: #{tpu_custom_call.1} parent=39 // pred_check_branch
          %416 = sbr.rel (%p414) target = $region60
        $region59: #{tpu_custom_call.1} parent=39 // pred_region
          %417 = vst [vmem:[#allocation2] sm:$0xff] 0.0
          %418 = vst [vmem:[#allocation2 + $0x8] sm:$0xff] 0.0
          %419 = vst [vmem:[#allocation2 + $0x10] sm:$0xff] 0.0
          %420 = vst [vmem:[#allocation2 + $0x18] sm:$0xff] 0.0
        $region60: #{tpu_custom_call.1} parent=39 // pred_fallthru
          _
        %v421 = vld [vmem:[%s339] sm:$0xff]
        %v422 = vld [vmem:[%s339 + $0x8] sm:$0xff]
        %v423 = vld [vmem:[%s339 + $0x10] sm:$0xff]
        %v424 = vld [vmem:[%s339 + $0x18] sm:$0xff]
        %v425 = vld [vmem:[%s339 + $0x20] sm:$0xff]
        %v426 = vld [vmem:[%s339 + $0x28] sm:$0xff]
        %v427 = vld [vmem:[%s339 + $0x30] sm:$0xff]
        %v428 = vld [vmem:[%s339 + $0x38] sm:$0xff]
        %v429 = vld [vmem:[%s339 + $0x40] sm:$0xff]
        %v430 = vld [vmem:[%s339 + $0x48] sm:$0xff]
        %v431 = vld [vmem:[%s339 + $0x50] sm:$0xff]
        %v432 = vld [vmem:[%s339 + $0x58] sm:$0xff]
        %v433 = vld [vmem:[%s339 + $0x60] sm:$0xff]
        %v434 = vld [vmem:[%s339 + $0x68] sm:$0xff]
        %v435 = vld [vmem:[%s339 + $0x70] sm:$0xff]
        %v436 = vld [vmem:[%s339 + $0x78] sm:$0xff]
        %v437 = vld [vmem:[%s339 + $0x80] sm:$0xff]
        %v438 = vld [vmem:[%s339 + $0x88] sm:$0xff]
        %v439 = vld [vmem:[%s339 + $0x90] sm:$0xff]
        %v440 = vld [vmem:[%s339 + $0x98] sm:$0xff]
        %v441 = vld [vmem:[%s339 + $0xa0] sm:$0xff]
        %v442 = vld [vmem:[%s339 + $0xa8] sm:$0xff]
        %v443 = vld [vmem:[%s339 + $0xb0] sm:$0xff]
        %v444 = vld [vmem:[%s339 + $0xb8] sm:$0xff]
        %v445 = vld [vmem:[%s339 + $0xc0] sm:$0xff]
        %v446 = vld [vmem:[%s339 + $0xc8] sm:$0xff]
        %v447 = vld [vmem:[%s339 + $0xd0] sm:$0xff]
        %v448 = vld [vmem:[%s339 + $0xd8] sm:$0xff]
        %v449 = vld [vmem:[%s339 + $0xe0] sm:$0xff]
        %v450 = vld [vmem:[%s339 + $0xe8] sm:$0xff]
        %v451 = vld [vmem:[%s339 + $0xf0] sm:$0xff]
        %v452 = vld [vmem:[%s339 + $0xf8] sm:$0xff]
        %v453 = vunpack.c.0.s8 %v421
        %v454 = vunpack.c.0.s8 %v422
        %v455 = vunpack.c.1.s8 %v421
        %v456 = vunpack.c.1.s8 %v422
        %v457 = vunpack.c.2.s8 %v421
        %v458 = vunpack.c.2.s8 %v422
        %v459 = vunpack.c.3.s8 %v421
        %v460 = vunpack.c.3.s8 %v422
        %v461 = vunpack.c.0.s8 %v423
        %v462 = vunpack.c.0.s8 %v424
        %v463 = vunpack.c.1.s8 %v423
        %v464 = vunpack.c.1.s8 %v424
        %v465 = vunpack.c.2.s8 %v423
        %v466 = vunpack.c.2.s8 %v424
        %v467 = vunpack.c.3.s8 %v423
        %v468 = vunpack.c.3.s8 %v424
        %v469 = vunpack.c.0.s8 %v425
        %v470 = vunpack.c.0.s8 %v426
        %v471 = vunpack.c.1.s8 %v425
        %v472 = vunpack.c.1.s8 %v426
        %v473 = vunpack.c.2.s8 %v425
        %v474 = vunpack.c.2.s8 %v426
        %v475 = vunpack.c.3.s8 %v425
        %v476 = vunpack.c.3.s8 %v426
        %v477 = vunpack.c.0.s8 %v427
        %v478 = vunpack.c.0.s8 %v428
        %v479 = vunpack.c.1.s8 %v427
        %v480 = vunpack.c.1.s8 %v428
        %v481 = vunpack.c.2.s8 %v427
        %v482 = vunpack.c.2.s8 %v428
        %v483 = vunpack.c.3.s8 %v427
        %v484 = vunpack.c.3.s8 %v428
        %v485 = vunpack.c.0.s8 %v429
        %v486 = vunpack.c.0.s8 %v430
        %v487 = vunpack.c.1.s8 %v429
        %v488 = vunpack.c.1.s8 %v430
        %v489 = vunpack.c.2.s8 %v429
        %v490 = vunpack.c.2.s8 %v430
        %v491 = vunpack.c.3.s8 %v429
        %v492 = vunpack.c.3.s8 %v430
        %v493 = vunpack.c.0.s8 %v431
        %v494 = vunpack.c.0.s8 %v432
        %v495 = vunpack.c.1.s8 %v431
        %v496 = vunpack.c.1.s8 %v432
        %v497 = vunpack.c.2.s8 %v431
        %v498 = vunpack.c.2.s8 %v432
        %v499 = vunpack.c.3.s8 %v431
        %v500 = vunpack.c.3.s8 %v432
        %v501 = vunpack.c.0.s8 %v433
        %v502 = vunpack.c.0.s8 %v434
        %v503 = vunpack.c.1.s8 %v433
        %v504 = vunpack.c.1.s8 %v434
        %v505 = vunpack.c.2.s8 %v433
        %v506 = vunpack.c.2.s8 %v434
        %v507 = vunpack.c.3.s8 %v433
        %v508 = vunpack.c.3.s8 %v434
        %v509 = vunpack.c.0.s8 %v435
        %v510 = vunpack.c.0.s8 %v436
        %v511 = vunpack.c.1.s8 %v435
        %v512 = vunpack.c.1.s8 %v436
        %v513 = vunpack.c.2.s8 %v435
        %v514 = vunpack.c.2.s8 %v436
        %v515 = vunpack.c.3.s8 %v435
        %v516 = vunpack.c.3.s8 %v436
        %v517 = vunpack.c.0.s8 %v437
        %v518 = vunpack.c.0.s8 %v438
        %v519 = vunpack.c.1.s8 %v437
        %v520 = vunpack.c.1.s8 %v438
        %v521 = vunpack.c.2.s8 %v437
        %v522 = vunpack.c.2.s8 %v438
        %v523 = vunpack.c.3.s8 %v437
        %v524 = vunpack.c.3.s8 %v438
        %v525 = vunpack.c.0.s8 %v439
        %v526 = vunpack.c.0.s8 %v440
        %v527 = vunpack.c.1.s8 %v439
        %v528 = vunpack.c.1.s8 %v440
        %v529 = vunpack.c.2.s8 %v439
        %v530 = vunpack.c.2.s8 %v440
        %v531 = vunpack.c.3.s8 %v439
        %v532 = vunpack.c.3.s8 %v440
        %v533 = vunpack.c.0.s8 %v441
        %v534 = vunpack.c.0.s8 %v442
        %v535 = vunpack.c.1.s8 %v441
        %v536 = vunpack.c.1.s8 %v442
        %v537 = vunpack.c.2.s8 %v441
        %v538 = vunpack.c.2.s8 %v442
        %v539 = vunpack.c.3.s8 %v441
        %v540 = vunpack.c.3.s8 %v442
        %v541 = vunpack.c.0.s8 %v443
        %v542 = vunpack.c.0.s8 %v444
        %v543 = vunpack.c.1.s8 %v443
        %v544 = vunpack.c.1.s8 %v444
        %v545 = vunpack.c.2.s8 %v443
        %v546 = vunpack.c.2.s8 %v444
        %v547 = vunpack.c.3.s8 %v443
        %v548 = vunpack.c.3.s8 %v444
        %v549 = vunpack.c.0.s8 %v445
        %v550 = vunpack.c.0.s8 %v446
        %v551 = vunpack.c.1.s8 %v445
        %v552 = vunpack.c.1.s8 %v446
        %v553 = vunpack.c.2.s8 %v445
        %v554 = vunpack.c.2.s8 %v446
        %v555 = vunpack.c.3.s8 %v445
        %v556 = vunpack.c.3.s8 %v446
        %v557 = vunpack.c.0.s8 %v447
        %v558 = vunpack.c.0.s8 %v448
        %v559 = vunpack.c.1.s8 %v447
        %v560 = vunpack.c.1.s8 %v448
        %v561 = vunpack.c.2.s8 %v447
        %v562 = vunpack.c.2.s8 %v448
        %v563 = vunpack.c.3.s8 %v447
        %v564 = vunpack.c.3.s8 %v448
        %v565 = vunpack.c.0.s8 %v449
        %v566 = vunpack.c.0.s8 %v450
        %v567 = vunpack.c.1.s8 %v449
        %v568 = vunpack.c.1.s8 %v450
        %v569 = vunpack.c.2.s8 %v449
        %v570 = vunpack.c.2.s8 %v450
        %v571 = vunpack.c.3.s8 %v449
        %v572 = vunpack.c.3.s8 %v450
        %v573 = vunpack.c.0.s8 %v451
        %v574 = vunpack.c.0.s8 %v452
        %v575 = vunpack.c.1.s8 %v451
        %v576 = vunpack.c.1.s8 %v452
        %v577 = vunpack.c.2.s8 %v451
        %v578 = vunpack.c.2.s8 %v452
        %v579 = vunpack.c.3.s8 %v451
        %v580 = vunpack.c.3.s8 %v452
        %v581 = vand.u32 %v453, 7
        %v582 = vand.u32 %v454, 7
        %v583 = vand.u32 %v455, 7
        %v584 = vand.u32 %v456, 7
        %v585 = vand.u32 %v457, 7
        %v586 = vand.u32 %v458, 7
        %v587 = vand.u32 %v459, 7
        %v588 = vand.u32 %v460, 7
        %v589 = vand.u32 %v461, 7
        %v590 = vand.u32 %v462, 7
        %v591 = vand.u32 %v463, 7
        %v592 = vand.u32 %v464, 7
        %v593 = vand.u32 %v465, 7
        %v594 = vand.u32 %v466, 7
        %v595 = vand.u32 %v467, 7
        %v596 = vand.u32 %v468, 7
        %v597 = vand.u32 %v469, 7
        %v598 = vand.u32 %v470, 7
        %v599 = vand.u32 %v471, 7
        %v600 = vand.u32 %v472, 7
        %v601 = vand.u32 %v473, 7
        %v602 = vand.u32 %v474, 7
        %v603 = vand.u32 %v475, 7
        %v604 = vand.u32 %v476, 7
        %v605 = vand.u32 %v477, 7
        %v606 = vand.u32 %v478, 7
        %v607 = vand.u32 %v479, 7
        %v608 = vand.u32 %v480, 7
        %v609 = vand.u32 %v481, 7
        %v610 = vand.u32 %v482, 7
        %v611 = vand.u32 %v483, 7
        %v612 = vand.u32 %v484, 7
        %v613 = vand.u32 %v485, 7
        %v614 = vand.u32 %v486, 7
        %v615 = vand.u32 %v487, 7
        %v616 = vand.u32 %v488, 7
        %v617 = vand.u32 %v489, 7
        %v618 = vand.u32 %v490, 7
        %v619 = vand.u32 %v491, 7
        %v620 = vand.u32 %v492, 7
        %v621 = vand.u32 %v493, 7
        %v622 = vand.u32 %v494, 7
        %v623 = vand.u32 %v495, 7
        %v624 = vand.u32 %v496, 7
        %v625 = vand.u32 %v497, 7
        %v626 = vand.u32 %v498, 7
        %v627 = vand.u32 %v499, 7
        %v628 = vand.u32 %v500, 7
        %v629 = vand.u32 %v501, 7
        %v630 = vand.u32 %v502, 7
        %v631 = vand.u32 %v503, 7
        %v632 = vand.u32 %v504, 7
        %v633 = vand.u32 %v505, 7
        %v634 = vand.u32 %v506, 7
        %v635 = vand.u32 %v507, 7
        %v636 = vand.u32 %v508, 7
        %v637 = vand.u32 %v509, 7
        %v638 = vand.u32 %v510, 7
        %v639 = vand.u32 %v511, 7
        %v640 = vand.u32 %v512, 7
        %v641 = vand.u32 %v513, 7
        %v642 = vand.u32 %v514, 7
        %v643 = vand.u32 %v515, 7
        %v644 = vand.u32 %v516, 7
        %v645 = vand.u32 %v517, 7
        %v646 = vand.u32 %v518, 7
        %v647 = vand.u32 %v519, 7
        %v648 = vand.u32 %v520, 7
        %v649 = vand.u32 %v521, 7
        %v650 = vand.u32 %v522, 7
        %v651 = vand.u32 %v523, 7
        %v652 = vand.u32 %v524, 7
        %v653 = vand.u32 %v525, 7
        %v654 = vand.u32 %v526, 7
        %v655 = vand.u32 %v527, 7
        %v656 = vand.u32 %v528, 7
        %v657 = vand.u32 %v529, 7
        %v658 = vand.u32 %v530, 7
        %v659 = vand.u32 %v531, 7
        %v660 = vand.u32 %v532, 7
        %v661 = vand.u32 %v533, 7
        %v662 = vand.u32 %v534, 7
        %v663 = vand.u32 %v535, 7
        %v664 = vand.u32 %v536, 7
        %v665 = vand.u32 %v537, 7
        %v666 = vand.u32 %v538, 7
        %v667 = vand.u32 %v539, 7
        %v668 = vand.u32 %v540, 7
        %v669 = vand.u32 %v541, 7
        %v670 = vand.u32 %v542, 7
        %v671 = vand.u32 %v543, 7
        %v672 = vand.u32 %v544, 7
        %v673 = vand.u32 %v545, 7
        %v674 = vand.u32 %v546, 7
        %v675 = vand.u32 %v547, 7
        %v676 = vand.u32 %v548, 7
        %v677 = vand.u32 %v549, 7
        %v678 = vand.u32 %v550, 7
        %v679 = vand.u32 %v551, 7
        %v680 = vand.u32 %v552, 7
        %v681 = vand.u32 %v553, 7
        %v682 = vand.u32 %v554, 7
        %v683 = vand.u32 %v555, 7
        %v684 = vand.u32 %v556, 7
        %v685 = vand.u32 %v557, 7
        %v686 = vand.u32 %v558, 7
        %v687 = vand.u32 %v559, 7
        %v688 = vand.u32 %v560, 7
        %v689 = vand.u32 %v561, 7
        %v690 = vand.u32 %v562, 7
        %v691 = vand.u32 %v563, 7
        %v692 = vand.u32 %v564, 7
        %v693 = vand.u32 %v565, 7
        %v694 = vand.u32 %v566, 7
        %v695 = vand.u32 %v567, 7
        %v696 = vand.u32 %v568, 7
        %v697 = vand.u32 %v569, 7
        %v698 = vand.u32 %v570, 7
        %v699 = vand.u32 %v571, 7
        %v700 = vand.u32 %v572, 7
        %v701 = vand.u32 %v573, 7
        %v702 = vand.u32 %v574, 7
        %v703 = vand.u32 %v575, 7
        %v704 = vand.u32 %v576, 7
        %v705 = vand.u32 %v577, 7
        %v706 = vand.u32 %v578, 7
        %v707 = vand.u32 %v579, 7
        %v708 = vand.u32 %v580, 7
        %v709 = vcvt.s32.f32 %v581
        %v710 = vcvt.s32.f32 %v582
        %v711 = vcvt.s32.f32 %v583
        %v712 = vcvt.s32.f32 %v584
        %v713 = vcvt.s32.f32 %v585
        %v714 = vcvt.s32.f32 %v586
        %v715 = vcvt.s32.f32 %v587
        %v716 = vcvt.s32.f32 %v588
        %v717 = vcvt.s32.f32 %v589
        %v718 = vcvt.s32.f32 %v590
        %v719 = vcvt.s32.f32 %v591
        %v720 = vcvt.s32.f32 %v592
        %v721 = vcvt.s32.f32 %v593
        %v722 = vcvt.s32.f32 %v594
        %v723 = vcvt.s32.f32 %v595
        %v724 = vcvt.s32.f32 %v596
        %v725 = vcvt.s32.f32 %v597
        %v726 = vcvt.s32.f32 %v598
        %v727 = vcvt.s32.f32 %v599
        %v728 = vcvt.s32.f32 %v600
        %v729 = vcvt.s32.f32 %v601
        %v730 = vcvt.s32.f32 %v602
        %v731 = vcvt.s32.f32 %v603
        %v732 = vcvt.s32.f32 %v604
        %v733 = vcvt.s32.f32 %v605
        %v734 = vcvt.s32.f32 %v606
        %v735 = vcvt.s32.f32 %v607
        %v736 = vcvt.s32.f32 %v608
        %v737 = vcvt.s32.f32 %v609
        %v738 = vcvt.s32.f32 %v610
        %v739 = vcvt.s32.f32 %v611
        %v740 = vcvt.s32.f32 %v612
        %v741 = vcvt.s32.f32 %v613
        %v742 = vcvt.s32.f32 %v614
        %v743 = vcvt.s32.f32 %v615
        %v744 = vcvt.s32.f32 %v616
        %v745 = vcvt.s32.f32 %v617
        %v746 = vcvt.s32.f32 %v618
        %v747 = vcvt.s32.f32 %v619
        %v748 = vcvt.s32.f32 %v620
        %v749 = vcvt.s32.f32 %v621
        %v750 = vcvt.s32.f32 %v622
        %v751 = vcvt.s32.f32 %v623
        %v752 = vcvt.s32.f32 %v624
        %v753 = vcvt.s32.f32 %v625
        %v754 = vcvt.s32.f32 %v626
        %v755 = vcvt.s32.f32 %v627
        %v756 = vcvt.s32.f32 %v628
        %v757 = vcvt.s32.f32 %v629
        %v758 = vcvt.s32.f32 %v630
        %v759 = vcvt.s32.f32 %v631
        %v760 = vcvt.s32.f32 %v632
        %v761 = vcvt.s32.f32 %v633
        %v762 = vcvt.s32.f32 %v634
        %v763 = vcvt.s32.f32 %v635
        %v764 = vcvt.s32.f32 %v636
        %v765 = vcvt.s32.f32 %v637
        %v766 = vcvt.s32.f32 %v638
        %v767 = vcvt.s32.f32 %v639
        %v768 = vcvt.s32.f32 %v640
        %v769 = vcvt.s32.f32 %v641
        %v770 = vcvt.s32.f32 %v642
        %v771 = vcvt.s32.f32 %v643
        %v772 = vcvt.s32.f32 %v644
        %v773 = vcvt.s32.f32 %v645
        %v774 = vcvt.s32.f32 %v646
        %v775 = vcvt.s32.f32 %v647
        %v776 = vcvt.s32.f32 %v648
        %v777 = vcvt.s32.f32 %v649
        %v778 = vcvt.s32.f32 %v650
        %v779 = vcvt.s32.f32 %v651
        %v780 = vcvt.s32.f32 %v652
        %v781 = vcvt.s32.f32 %v653
        %v782 = vcvt.s32.f32 %v654
        %v783 = vcvt.s32.f32 %v655
        %v784 = vcvt.s32.f32 %v656
        %v785 = vcvt.s32.f32 %v657
        %v786 = vcvt.s32.f32 %v658
        %v787 = vcvt.s32.f32 %v659
        %v788 = vcvt.s32.f32 %v660
        %v789 = vcvt.s32.f32 %v661
        %v790 = vcvt.s32.f32 %v662
        %v791 = vcvt.s32.f32 %v663
        %v792 = vcvt.s32.f32 %v664
        %v793 = vcvt.s32.f32 %v665
        %v794 = vcvt.s32.f32 %v666
        %v795 = vcvt.s32.f32 %v667
        %v796 = vcvt.s32.f32 %v668
        %v797 = vcvt.s32.f32 %v669
        %v798 = vcvt.s32.f32 %v670
        %v799 = vcvt.s32.f32 %v671
        %v800 = vcvt.s32.f32 %v672
        %v801 = vcvt.s32.f32 %v673
        %v802 = vcvt.s32.f32 %v674
        %v803 = vcvt.s32.f32 %v675
        %v804 = vcvt.s32.f32 %v676
        %v805 = vcvt.s32.f32 %v677
        %v806 = vcvt.s32.f32 %v678
        %v807 = vcvt.s32.f32 %v679
        %v808 = vcvt.s32.f32 %v680
        %v809 = vcvt.s32.f32 %v681
        %v810 = vcvt.s32.f32 %v682
        %v811 = vcvt.s32.f32 %v683
        %v812 = vcvt.s32.f32 %v684
        %v813 = vcvt.s32.f32 %v685
        %v814 = vcvt.s32.f32 %v686
        %v815 = vcvt.s32.f32 %v687
        %v816 = vcvt.s32.f32 %v688
        %v817 = vcvt.s32.f32 %v689
        %v818 = vcvt.s32.f32 %v690
        %v819 = vcvt.s32.f32 %v691
        %v820 = vcvt.s32.f32 %v692
        %v821 = vcvt.s32.f32 %v693
        %v822 = vcvt.s32.f32 %v694
        %v823 = vcvt.s32.f32 %v695
        %v824 = vcvt.s32.f32 %v696
        %v825 = vcvt.s32.f32 %v697
        %v826 = vcvt.s32.f32 %v698
        %v827 = vcvt.s32.f32 %v699
        %v828 = vcvt.s32.f32 %v700
        %v829 = vcvt.s32.f32 %v701
        %v830 = vcvt.s32.f32 %v702
        %v831 = vcvt.s32.f32 %v703
        %v832 = vcvt.s32.f32 %v704
        %v833 = vcvt.s32.f32 %v705
        %v834 = vcvt.s32.f32 %v706
        %v835 = vcvt.s32.f32 %v707
        %v836 = vcvt.s32.f32 %v708
        %v837 = vshra.s32 %v453, 4
        %v838 = vshra.s32 %v454, 4
        %v839 = vshra.s32 %v455, 4
        %v840 = vshra.s32 %v456, 4
        %v841 = vshra.s32 %v457, 4
        %v842 = vshra.s32 %v458, 4
        %v843 = vshra.s32 %v459, 4
        %v844 = vshra.s32 %v460, 4
        %v845 = vshra.s32 %v461, 4
        %v846 = vshra.s32 %v462, 4
        %v847 = vshra.s32 %v463, 4
        %v848 = vshra.s32 %v464, 4
        %v849 = vshra.s32 %v465, 4
        %v850 = vshra.s32 %v466, 4
        %v851 = vshra.s32 %v467, 4
        %v852 = vshra.s32 %v468, 4
        %v853 = vshra.s32 %v469, 4
        %v854 = vshra.s32 %v470, 4
        %v855 = vshra.s32 %v471, 4
        %v856 = vshra.s32 %v472, 4
        %v857 = vshra.s32 %v473, 4
        %v858 = vshra.s32 %v474, 4
        %v859 = vshra.s32 %v475, 4
        %v860 = vshra.s32 %v476, 4
        %v861 = vshra.s32 %v477, 4
        %v862 = vshra.s32 %v478, 4
        %v863 = vshra.s32 %v479, 4
        %v864 = vshra.s32 %v480, 4
        %v865 = vshra.s32 %v481, 4
        %v866 = vshra.s32 %v482, 4
        %v867 = vshra.s32 %v483, 4
        %v868 = vshra.s32 %v484, 4
        %v869 = vshra.s32 %v485, 4
        %v870 = vshra.s32 %v486, 4
        %v871 = vshra.s32 %v487, 4
        %v872 = vshra.s32 %v488, 4
        %v873 = vshra.s32 %v489, 4
        %v874 = vshra.s32 %v490, 4
        %v875 = vshra.s32 %v491, 4
        %v876 = vshra.s32 %v492, 4
        %v877 = vshra.s32 %v493, 4
        %v878 = vshra.s32 %v494, 4
        %v879 = vshra.s32 %v495, 4
        %v880 = vshra.s32 %v496, 4
        %v881 = vshra.s32 %v497, 4
        %v882 = vshra.s32 %v498, 4
        %v883 = vshra.s32 %v499, 4
        %v884 = vshra.s32 %v500, 4
        %v885 = vshra.s32 %v501, 4
        %v886 = vshra.s32 %v502, 4
        %v887 = vshra.s32 %v503, 4
        %v888 = vshra.s32 %v504, 4
        %v889 = vshra.s32 %v505, 4
        %v890 = vshra.s32 %v506, 4
        %v891 = vshra.s32 %v507, 4
        %v892 = vshra.s32 %v508, 4
        %v893 = vshra.s32 %v509, 4
        %v894 = vshra.s32 %v510, 4
        %v895 = vshra.s32 %v511, 4
        %v896 = vshra.s32 %v512, 4
        %v897 = vshra.s32 %v513, 4
        %v898 = vshra.s32 %v514, 4
        %v899 = vshra.s32 %v515, 4
        %v900 = vshra.s32 %v516, 4
        %v901 = vshra.s32 %v517, 4
        %v902 = vshra.s32 %v518, 4
        %v903 = vshra.s32 %v519, 4
        %v904 = vshra.s32 %v520, 4
        %v905 = vshra.s32 %v521, 4
        %v906 = vshra.s32 %v522, 4
        %v907 = vshra.s32 %v523, 4
        %v908 = vshra.s32 %v524, 4
        %v909 = vshra.s32 %v525, 4
        %v910 = vshra.s32 %v526, 4
        %v911 = vshra.s32 %v527, 4
        %v912 = vshra.s32 %v528, 4
        %v913 = vshra.s32 %v529, 4
        %v914 = vshra.s32 %v530, 4
        %v915 = vshra.s32 %v531, 4
        %v916 = vshra.s32 %v532, 4
        %v917 = vshra.s32 %v533, 4
        %v918 = vshra.s32 %v534, 4
        %v919 = vshra.s32 %v535, 4
        %v920 = vshra.s32 %v536, 4
        %v921 = vshra.s32 %v537, 4
        %v922 = vshra.s32 %v538, 4
        %v923 = vshra.s32 %v539, 4
        %v924 = vshra.s32 %v540, 4
        %v925 = vshra.s32 %v541, 4
        %v926 = vshra.s32 %v542, 4
        %v927 = vshra.s32 %v543, 4
        %v928 = vshra.s32 %v544, 4
        %v929 = vshra.s32 %v545, 4
        %v930 = vshra.s32 %v546, 4
        %v931 = vshra.s32 %v547, 4
        %v932 = vshra.s32 %v548, 4
        %v933 = vshra.s32 %v549, 4
        %v934 = vshra.s32 %v550, 4
        %v935 = vshra.s32 %v551, 4
        %v936 = vshra.s32 %v552, 4
        %v937 = vshra.s32 %v553, 4
        %v938 = vshra.s32 %v554, 4
        %v939 = vshra.s32 %v555, 4
        %v940 = vshra.s32 %v556, 4
        %v941 = vshra.s32 %v557, 4
        %v942 = vshra.s32 %v558, 4
        %v943 = vshra.s32 %v559, 4
        %v944 = vshra.s32 %v560, 4
        %v945 = vshra.s32 %v561, 4
        %v946 = vshra.s32 %v562, 4
        %v947 = vshra.s32 %v563, 4
        %v948 = vshra.s32 %v564, 4
        %v949 = vshra.s32 %v565, 4
        %v950 = vshra.s32 %v566, 4
        %v951 = vshra.s32 %v567, 4
        %v952 = vshra.s32 %v568, 4
        %v953 = vshra.s32 %v569, 4
        %v954 = vshra.s32 %v570, 4
        %v955 = vshra.s32 %v571, 4
        %v956 = vshra.s32 %v572, 4
        %v957 = vshra.s32 %v573, 4
        %v958 = vshra.s32 %v574, 4
        %v959 = vshra.s32 %v575, 4
        %v960 = vshra.s32 %v576, 4
        %v961 = vshra.s32 %v577, 4
        %v962 = vshra.s32 %v578, 4
        %v963 = vshra.s32 %v579, 4
        %v964 = vshra.s32 %v580, 4
        %v965 = vand.u32 %v837, 7
        %v966 = vand.u32 %v838, 7
        %v967 = vand.u32 %v839, 7
        %v968 = vand.u32 %v840, 7
        %v969 = vand.u32 %v841, 7
        %v970 = vand.u32 %v842, 7
        %v971 = vand.u32 %v843, 7
        %v972 = vand.u32 %v844, 7
        %v973 = vand.u32 %v845, 7
        %v974 = vand.u32 %v846, 7
        %v975 = vand.u32 %v847, 7
        %v976 = vand.u32 %v848, 7
        %v977 = vand.u32 %v849, 7
        %v978 = vand.u32 %v850, 7
        %v979 = vand.u32 %v851, 7
        %v980 = vand.u32 %v852, 7
        %v981 = vand.u32 %v853, 7
        %v982 = vand.u32 %v854, 7
        %v983 = vand.u32 %v855, 7
        %v984 = vand.u32 %v856, 7
        %v985 = vand.u32 %v857, 7
        %v986 = vand.u32 %v858, 7
        %v987 = vand.u32 %v859, 7
        %v988 = vand.u32 %v860, 7
        %v989 = vand.u32 %v861, 7
        %v990 = vand.u32 %v862, 7
        %v991 = vand.u32 %v863, 7
        %v992 = vand.u32 %v864, 7
        %v993 = vand.u32 %v865, 7
        %v994 = vand.u32 %v866, 7
        %v995 = vand.u32 %v867, 7
        %v996 = vand.u32 %v868, 7
        %v997 = vand.u32 %v869, 7
        %v998 = vand.u32 %v870, 7
        %v999 = vand.u32 %v871, 7
        %v1000 = vand.u32 %v872, 7
        %v1001 = vand.u32 %v873, 7
        %v1002 = vand.u32 %v874, 7
        %v1003 = vand.u32 %v875, 7
        %v1004 = vand.u32 %v876, 7
        %v1005 = vand.u32 %v877, 7
        %v1006 = vand.u32 %v878, 7
        %v1007 = vand.u32 %v879, 7
        %v1008 = vand.u32 %v880, 7
        %v1009 = vand.u32 %v881, 7
        %v1010 = vand.u32 %v882, 7
        %v1011 = vand.u32 %v883, 7
        %v1012 = vand.u32 %v884, 7
        %v1013 = vand.u32 %v885, 7
        %v1014 = vand.u32 %v886, 7
        %v1015 = vand.u32 %v887, 7
        %v1016 = vand.u32 %v888, 7
        %v1017 = vand.u32 %v889, 7
        %v1018 = vand.u32 %v890, 7
        %v1019 = vand.u32 %v891, 7
        %v1020 = vand.u32 %v892, 7
        %v1021 = vand.u32 %v893, 7
        %v1022 = vand.u32 %v894, 7
        %v1023 = vand.u32 %v895, 7
        %v1024 = vand.u32 %v896, 7
        %v1025 = vand.u32 %v897, 7
        %v1026 = vand.u32 %v898, 7
        %v1027 = vand.u32 %v899, 7
        %v1028 = vand.u32 %v900, 7
        %v1029 = vand.u32 %v901, 7
        %v1030 = vand.u32 %v902, 7
        %v1031 = vand.u32 %v903, 7
        %v1032 = vand.u32 %v904, 7
        %v1033 = vand.u32 %v905, 7
        %v1034 = vand.u32 %v906, 7
        %v1035 = vand.u32 %v907, 7
        %v1036 = vand.u32 %v908, 7
        %v1037 = vand.u32 %v909, 7
        %v1038 = vand.u32 %v910, 7
        %v1039 = vand.u32 %v911, 7
        %v1040 = vand.u32 %v912, 7
        %v1041 = vand.u32 %v913, 7
        %v1042 = vand.u32 %v914, 7
        %v1043 = vand.u32 %v915, 7
        %v1044 = vand.u32 %v916, 7
        %v1045 = vand.u32 %v917, 7
        %v1046 = vand.u32 %v918, 7
        %v1047 = vand.u32 %v919, 7
        %v1048 = vand.u32 %v920, 7
        %v1049 = vand.u32 %v921, 7
        %v1050 = vand.u32 %v922, 7
        %v1051 = vand.u32 %v923, 7
        %v1052 = vand.u32 %v924, 7
        %v1053 = vand.u32 %v925, 7
        %v1054 = vand.u32 %v926, 7
        %v1055 = vand.u32 %v927, 7
        %v1056 = vand.u32 %v928, 7
        %v1057 = vand.u32 %v929, 7
        %v1058 = vand.u32 %v930, 7
        %v1059 = vand.u32 %v931, 7
        %v1060 = vand.u32 %v932, 7
        %v1061 = vand.u32 %v933, 7
        %v1062 = vand.u32 %v934, 7
        %v1063 = vand.u32 %v935, 7
        %v1064 = vand.u32 %v936, 7
        %v1065 = vand.u32 %v937, 7
        %v1066 = vand.u32 %v938, 7
        %v1067 = vand.u32 %v939, 7
        %v1068 = vand.u32 %v940, 7
        %v1069 = vand.u32 %v941, 7
        %v1070 = vand.u32 %v942, 7
        %v1071 = vand.u32 %v943, 7
        %v1072 = vand.u32 %v944, 7
        %v1073 = vand.u32 %v945, 7
        %v1074 = vand.u32 %v946, 7
        %v1075 = vand.u32 %v947, 7
        %v1076 = vand.u32 %v948, 7
        %v1077 = vand.u32 %v949, 7
        %v1078 = vand.u32 %v950, 7
        %v1079 = vand.u32 %v951, 7
        %v1080 = vand.u32 %v952, 7
        %v1081 = vand.u32 %v953, 7
        %v1082 = vand.u32 %v954, 7
        %v1083 = vand.u32 %v955, 7
        %v1084 = vand.u32 %v956, 7
        %v1085 = vand.u32 %v957, 7
        %v1086 = vand.u32 %v958, 7
        %v1087 = vand.u32 %v959, 7
        %v1088 = vand.u32 %v960, 7
        %v1089 = vand.u32 %v961, 7
        %v1090 = vand.u32 %v962, 7
        %v1091 = vand.u32 %v963, 7
        %v1092 = vand.u32 %v964, 7
        %v1093 = vcvt.s32.f32 %v965
        %v1094 = vcvt.s32.f32 %v966
        %v1095 = vcvt.s32.f32 %v967
        %v1096 = vcvt.s32.f32 %v968
        %v1097 = vcvt.s32.f32 %v969
        %v1098 = vcvt.s32.f32 %v970
        %v1099 = vcvt.s32.f32 %v971
        %v1100 = vcvt.s32.f32 %v972
        %v1101 = vcvt.s32.f32 %v973
        %v1102 = vcvt.s32.f32 %v974
        %v1103 = vcvt.s32.f32 %v975
        %v1104 = vcvt.s32.f32 %v976
        %v1105 = vcvt.s32.f32 %v977
        %v1106 = vcvt.s32.f32 %v978
        %v1107 = vcvt.s32.f32 %v979
        %v1108 = vcvt.s32.f32 %v980
        %v1109 = vcvt.s32.f32 %v981
        %v1110 = vcvt.s32.f32 %v982
        %v1111 = vcvt.s32.f32 %v983
        %v1112 = vcvt.s32.f32 %v984
        %v1113 = vcvt.s32.f32 %v985
        %v1114 = vcvt.s32.f32 %v986
        %v1115 = vcvt.s32.f32 %v987
        %v1116 = vcvt.s32.f32 %v988
        %v1117 = vcvt.s32.f32 %v989
        %v1118 = vcvt.s32.f32 %v990
        %v1119 = vcvt.s32.f32 %v991
        %v1120 = vcvt.s32.f32 %v992
        %v1121 = vcvt.s32.f32 %v993
        %v1122 = vcvt.s32.f32 %v994
        %v1123 = vcvt.s32.f32 %v995
        %v1124 = vcvt.s32.f32 %v996
        %v1125 = vcvt.s32.f32 %v997
        %v1126 = vcvt.s32.f32 %v998
        %v1127 = vcvt.s32.f32 %v999
        %v1128 = vcvt.s32.f32 %v1000
        %v1129 = vcvt.s32.f32 %v1001
        %v1130 = vcvt.s32.f32 %v1002
        %v1131 = vcvt.s32.f32 %v1003
        %v1132 = vcvt.s32.f32 %v1004
        %v1133 = vcvt.s32.f32 %v1005
        %v1134 = vcvt.s32.f32 %v1006
        %v1135 = vcvt.s32.f32 %v1007
        %v1136 = vcvt.s32.f32 %v1008
        %v1137 = vcvt.s32.f32 %v1009
        %v1138 = vcvt.s32.f32 %v1010
        %v1139 = vcvt.s32.f32 %v1011
        %v1140 = vcvt.s32.f32 %v1012
        %v1141 = vcvt.s32.f32 %v1013
        %v1142 = vcvt.s32.f32 %v1014
        %v1143 = vcvt.s32.f32 %v1015
        %v1144 = vcvt.s32.f32 %v1016
        %v1145 = vcvt.s32.f32 %v1017
        %v1146 = vcvt.s32.f32 %v1018
        %v1147 = vcvt.s32.f32 %v1019
        %v1148 = vcvt.s32.f32 %v1020
        %v1149 = vcvt.s32.f32 %v1021
        %v1150 = vcvt.s32.f32 %v1022
        %v1151 = vcvt.s32.f32 %v1023
        %v1152 = vcvt.s32.f32 %v1024
        %v1153 = vcvt.s32.f32 %v1025
        %v1154 = vcvt.s32.f32 %v1026
        %v1155 = vcvt.s32.f32 %v1027
        %v1156 = vcvt.s32.f32 %v1028
        %v1157 = vcvt.s32.f32 %v1029
        %v1158 = vcvt.s32.f32 %v1030
        %v1159 = vcvt.s32.f32 %v1031
        %v1160 = vcvt.s32.f32 %v1032
        %v1161 = vcvt.s32.f32 %v1033
        %v1162 = vcvt.s32.f32 %v1034
        %v1163 = vcvt.s32.f32 %v1035
        %v1164 = vcvt.s32.f32 %v1036
        %v1165 = vcvt.s32.f32 %v1037
        %v1166 = vcvt.s32.f32 %v1038
        %v1167 = vcvt.s32.f32 %v1039
        %v1168 = vcvt.s32.f32 %v1040
        %v1169 = vcvt.s32.f32 %v1041
        %v1170 = vcvt.s32.f32 %v1042
        %v1171 = vcvt.s32.f32 %v1043
        %v1172 = vcvt.s32.f32 %v1044
        %v1173 = vcvt.s32.f32 %v1045
        %v1174 = vcvt.s32.f32 %v1046
        %v1175 = vcvt.s32.f32 %v1047
        %v1176 = vcvt.s32.f32 %v1048
        %v1177 = vcvt.s32.f32 %v1049
        %v1178 = vcvt.s32.f32 %v1050
        %v1179 = vcvt.s32.f32 %v1051
        %v1180 = vcvt.s32.f32 %v1052
        %v1181 = vcvt.s32.f32 %v1053
        %v1182 = vcvt.s32.f32 %v1054
        %v1183 = vcvt.s32.f32 %v1055
        %v1184 = vcvt.s32.f32 %v1056
        %v1185 = vcvt.s32.f32 %v1057
        %v1186 = vcvt.s32.f32 %v1058
        %v1187 = vcvt.s32.f32 %v1059
        %v1188 = vcvt.s32.f32 %v1060
        %v1189 = vcvt.s32.f32 %v1061
        %v1190 = vcvt.s32.f32 %v1062
        %v1191 = vcvt.s32.f32 %v1063
        %v1192 = vcvt.s32.f32 %v1064
        %v1193 = vcvt.s32.f32 %v1065
        %v1194 = vcvt.s32.f32 %v1066
        %v1195 = vcvt.s32.f32 %v1067
        %v1196 = vcvt.s32.f32 %v1068
        %v1197 = vcvt.s32.f32 %v1069
        %v1198 = vcvt.s32.f32 %v1070
        %v1199 = vcvt.s32.f32 %v1071
        %v1200 = vcvt.s32.f32 %v1072
        %v1201 = vcvt.s32.f32 %v1073
        %v1202 = vcvt.s32.f32 %v1074
        %v1203 = vcvt.s32.f32 %v1075
        %v1204 = vcvt.s32.f32 %v1076
        %v1205 = vcvt.s32.f32 %v1077
        %v1206 = vcvt.s32.f32 %v1078
        %v1207 = vcvt.s32.f32 %v1079
        %v1208 = vcvt.s32.f32 %v1080
        %v1209 = vcvt.s32.f32 %v1081
        %v1210 = vcvt.s32.f32 %v1082
        %v1211 = vcvt.s32.f32 %v1083
        %v1212 = vcvt.s32.f32 %v1084
        %v1213 = vcvt.s32.f32 %v1085
        %v1214 = vcvt.s32.f32 %v1086
        %v1215 = vcvt.s32.f32 %v1087
        %v1216 = vcvt.s32.f32 %v1088
        %v1217 = vcvt.s32.f32 %v1089
        %v1218 = vcvt.s32.f32 %v1090
        %v1219 = vcvt.s32.f32 %v1091
        %v1220 = vcvt.s32.f32 %v1092
        %v1221 = vld [vmem:[%s348] sm:$0xff]
        %v1222 = vld [vmem:[%s348 + $0x8] sm:$0xff]
        %v1223 = vld [vmem:[%s348 + $0x10] sm:$0xff]
        %v1224 = vld [vmem:[%s348 + $0x18] sm:$0xff]
        %v1225 = vunpack.c.l.bf16 %v1221
        %v1226 = vunpack.c.h.bf16 %v1221
        %v1227 = vunpack.c.l.bf16 %v1222
        %v1228 = vunpack.c.h.bf16 %v1222
        %v1229 = vunpack.c.l.bf16 %v1223
        %v1230 = vunpack.c.h.bf16 %v1223
        %v1231 = vunpack.c.l.bf16 %v1224
        %v1232 = vunpack.c.h.bf16 %v1224
        %v1233 = vld [vmem:[%s357] sm:$0xff]
        %v1234 = vld [vmem:[%s357 + $0x8] sm:$0xff]
        %v1235 = vld [vmem:[%s357 + $0x10] sm:$0xff]
        %v1236 = vld [vmem:[%s357 + $0x18] sm:$0xff]
        %v1237 = vunpack.c.l.bf16 %v1233
        %v1238 = vunpack.c.h.bf16 %v1233
        %v1239 = vunpack.c.l.bf16 %v1234
        %v1240 = vunpack.c.h.bf16 %v1234
        %v1241 = vunpack.c.l.bf16 %v1235
        %v1242 = vunpack.c.h.bf16 %v1235
        %v1243 = vunpack.c.l.bf16 %v1236
        %v1244 = vunpack.c.h.bf16 %v1236
        %v1249 = vcombine.low %v1225, %v1226
        %v1250 = vcombine.high %v1225, %v1226
        %v1252 = vunpack.c.l.s4 1966171168
        %v1253 = vunpack.c.0.s8 %v1252
        %v1254 = vlaneseq
        %v1255 = vshrl.u32 %v1254, 7
        %v1256 = vsub.s32 %v1253, %v1255
        %v1257 = vrot.slane %v1249, %v1256
        %v1259 = vunpack.c.l.s4 1966171168
        %v1260 = vunpack.c.0.s8 %v1259
        %v1261 = vlaneseq
        %v1262 = vshrl.u32 %v1261, 7
        %v1263 = vsub.s32 %v1260, %v1262
        %v1264 = vrot.slane %v1250, %v1263
        %v1265 = vcombine.high %v1257, %v1257
        %v1266 = vcombine.high %v1264, %v1264
        %v1268 = vunpack.c.l.s4 1966171168
        %v1269 = vunpack.c.0.s8 %v1268
        %v1270 = vlaneseq
        %v1271 = vshrl.u32 %v1270, 7
        %v1272 = vsub.s32 %v1269, %v1271
        %v1273 = vrot.slane %v1257, %v1272
        %v1275 = vunpack.c.l.s4 1966171168
        %v1276 = vunpack.c.0.s8 %v1275
        %v1277 = vlaneseq
        %v1278 = vshrl.u32 %v1277, 7
        %v1279 = vsub.s32 %v1276, %v1278
        %v1280 = vrot.slane %v1264, %v1279
        %v1282 = vunpack.c.l.s4 1966171168
        %v1283 = vunpack.c.0.s8 %v1282
        %v1284 = vlaneseq
        %v1285 = vshrl.u32 %v1284, 7
        %v1286 = vsub.s32 %v1283, %v1285
        %v1287 = vrot.slane %v1265, %v1286
        %v1289 = vunpack.c.l.s4 1966171168
        %v1290 = vunpack.c.0.s8 %v1289
        %v1291 = vlaneseq
        %v1292 = vshrl.u32 %v1291, 7
        %v1293 = vsub.s32 %v1290, %v1292
        %v1294 = vrot.slane %v1266, %v1293
        %v1295 = vcombine.high %v1273, %v1273
        %v1296 = vcombine.high %v1280, %v1280
        %v1297 = vcombine.high %v1287, %v1287
        %v1298 = vcombine.high %v1294, %v1294
        %v1299 = vcombine.low %v1227, %v1228
        %v1300 = vcombine.high %v1227, %v1228
        %v1302 = vunpack.c.l.s4 1966171168
        %v1303 = vunpack.c.0.s8 %v1302
        %v1304 = vlaneseq
        %v1305 = vshrl.u32 %v1304, 7
        %v1306 = vsub.s32 %v1303, %v1305
        %v1307 = vrot.slane %v1299, %v1306
        %v1309 = vunpack.c.l.s4 1966171168
        %v1310 = vunpack.c.0.s8 %v1309
        %v1311 = vlaneseq
        %v1312 = vshrl.u32 %v1311, 7
        %v1313 = vsub.s32 %v1310, %v1312
        %v1314 = vrot.slane %v1300, %v1313
        %v1315 = vcombine.high %v1307, %v1307
        %v1316 = vcombine.high %v1314, %v1314
        %v1318 = vunpack.c.l.s4 1966171168
        %v1319 = vunpack.c.0.s8 %v1318
        %v1320 = vlaneseq
        %v1321 = vshrl.u32 %v1320, 7
        %v1322 = vsub.s32 %v1319, %v1321
        %v1323 = vrot.slane %v1307, %v1322
        %v1325 = vunpack.c.l.s4 1966171168
        %v1326 = vunpack.c.0.s8 %v1325
        %v1327 = vlaneseq
        %v1328 = vshrl.u32 %v1327, 7
        %v1329 = vsub.s32 %v1326, %v1328
        %v1330 = vrot.slane %v1314, %v1329
        %v1332 = vunpack.c.l.s4 1966171168
        %v1333 = vunpack.c.0.s8 %v1332
        %v1334 = vlaneseq
        %v1335 = vshrl.u32 %v1334, 7
        %v1336 = vsub.s32 %v1333, %v1335
        %v1337 = vrot.slane %v1315, %v1336
        %v1339 = vunpack.c.l.s4 1966171168
        %v1340 = vunpack.c.0.s8 %v1339
        %v1341 = vlaneseq
        %v1342 = vshrl.u32 %v1341, 7
        %v1343 = vsub.s32 %v1340, %v1342
        %v1344 = vrot.slane %v1316, %v1343
        %v1345 = vcombine.high %v1323, %v1323
        %v1346 = vcombine.high %v1330, %v1330
        %v1347 = vcombine.high %v1337, %v1337
        %v1348 = vcombine.high %v1344, %v1344
        %v1349 = vlaneseq
        %v1350 = vshrl.u32 %v1349, 7
        %v1351 = vsub.s32 0, %v1350
        %v1352 = vrot.slane %v1273, %v1351
        %v1353 = vlaneseq
        %v1354 = vshrl.u32 %v1353, 7
        %v1355 = vsub.s32 1, %v1354
        %v1356 = vrot.slane %v1273, %v1355
        %v1357 = vlaneseq
        %v1358 = vshrl.u32 %v1357, 7
        %v1359 = vsub.s32 0, %v1358
        %v1360 = vrot.slane %v1287, %v1359
        %v1361 = vlaneseq
        %v1362 = vshrl.u32 %v1361, 7
        %v1363 = vsub.s32 1, %v1362
        %v1364 = vrot.slane %v1287, %v1363
        %v1365 = vlaneseq
        %v1366 = vshrl.u32 %v1365, 7
        %v1367 = vsub.s32 0, %v1366
        %v1368 = vrot.slane %v1295, %v1367
        %v1369 = vlaneseq
        %v1370 = vshrl.u32 %v1369, 7
        %v1371 = vsub.s32 1, %v1370
        %v1372 = vrot.slane %v1295, %v1371
        %v1373 = vlaneseq
        %v1374 = vshrl.u32 %v1373, 7
        %v1375 = vsub.s32 0, %v1374
        %v1376 = vrot.slane %v1297, %v1375
        %v1377 = vlaneseq
        %v1378 = vshrl.u32 %v1377, 7
        %v1379 = vsub.s32 1, %v1378
        %v1380 = vrot.slane %v1297, %v1379
        %v1381 = vlaneseq
        %v1382 = vshrl.u32 %v1381, 7
        %v1383 = vsub.s32 0, %v1382
        %v1384 = vrot.slane %v1280, %v1383
        %v1385 = vlaneseq
        %v1386 = vshrl.u32 %v1385, 7
        %v1387 = vsub.s32 1, %v1386
        %v1388 = vrot.slane %v1280, %v1387
        %v1389 = vlaneseq
        %v1390 = vshrl.u32 %v1389, 7
        %v1391 = vsub.s32 0, %v1390
        %v1392 = vrot.slane %v1294, %v1391
        %v1393 = vlaneseq
        %v1394 = vshrl.u32 %v1393, 7
        %v1395 = vsub.s32 1, %v1394
        %v1396 = vrot.slane %v1294, %v1395
        %v1397 = vlaneseq
        %v1398 = vshrl.u32 %v1397, 7
        %v1399 = vsub.s32 0, %v1398
        %v1400 = vrot.slane %v1296, %v1399
        %v1401 = vlaneseq
        %v1402 = vshrl.u32 %v1401, 7
        %v1403 = vsub.s32 1, %v1402
        %v1404 = vrot.slane %v1296, %v1403
        %v1405 = vlaneseq
        %v1406 = vshrl.u32 %v1405, 7
        %v1407 = vsub.s32 0, %v1406
        %v1408 = vrot.slane %v1298, %v1407
        %v1409 = vlaneseq
        %v1410 = vshrl.u32 %v1409, 7
        %v1411 = vsub.s32 1, %v1410
        %v1412 = vrot.slane %v1298, %v1411
        %v1413 = vlaneseq
        %v1414 = vshrl.u32 %v1413, 7
        %v1415 = vsub.s32 0, %v1414
        %v1416 = vrot.slane %v1323, %v1415
        %v1417 = vlaneseq
        %v1418 = vshrl.u32 %v1417, 7
        %v1419 = vsub.s32 1, %v1418
        %v1420 = vrot.slane %v1323, %v1419
        %v1421 = vlaneseq
        %v1422 = vshrl.u32 %v1421, 7
        %v1423 = vsub.s32 0, %v1422
        %v1424 = vrot.slane %v1337, %v1423
        %v1425 = vlaneseq
        %v1426 = vshrl.u32 %v1425, 7
        %v1427 = vsub.s32 1, %v1426
        %v1428 = vrot.slane %v1337, %v1427
        %v1429 = vlaneseq
        %v1430 = vshrl.u32 %v1429, 7
        %v1431 = vsub.s32 0, %v1430
        %v1432 = vrot.slane %v1345, %v1431
        %v1433 = vlaneseq
        %v1434 = vshrl.u32 %v1433, 7
        %v1435 = vsub.s32 1, %v1434
        %v1436 = vrot.slane %v1345, %v1435
        %v1437 = vlaneseq
        %v1438 = vshrl.u32 %v1437, 7
        %v1439 = vsub.s32 0, %v1438
        %v1440 = vrot.slane %v1347, %v1439
        %v1441 = vlaneseq
        %v1442 = vshrl.u32 %v1441, 7
        %v1443 = vsub.s32 1, %v1442
        %v1444 = vrot.slane %v1347, %v1443
        %v1445 = vlaneseq
        %v1446 = vshrl.u32 %v1445, 7
        %v1447 = vsub.s32 0, %v1446
        %v1448 = vrot.slane %v1330, %v1447
        %v1449 = vlaneseq
        %v1450 = vshrl.u32 %v1449, 7
        %v1451 = vsub.s32 1, %v1450
        %v1452 = vrot.slane %v1330, %v1451
        %v1453 = vlaneseq
        %v1454 = vshrl.u32 %v1453, 7
        %v1455 = vsub.s32 0, %v1454
        %v1456 = vrot.slane %v1344, %v1455
        %v1457 = vlaneseq
        %v1458 = vshrl.u32 %v1457, 7
        %v1459 = vsub.s32 1, %v1458
        %v1460 = vrot.slane %v1344, %v1459
        %v1461 = vlaneseq
        %v1462 = vshrl.u32 %v1461, 7
        %v1463 = vsub.s32 0, %v1462
        %v1464 = vrot.slane %v1346, %v1463
        %v1465 = vlaneseq
        %v1466 = vshrl.u32 %v1465, 7
        %v1467 = vsub.s32 1, %v1466
        %v1468 = vrot.slane %v1346, %v1467
        %v1469 = vlaneseq
        %v1470 = vshrl.u32 %v1469, 7
        %v1471 = vsub.s32 0, %v1470
        %v1472 = vrot.slane %v1348, %v1471
        %v1473 = vlaneseq
        %v1474 = vshrl.u32 %v1473, 7
        %v1475 = vsub.s32 1, %v1474
        %v1476 = vrot.slane %v1348, %v1475
        %v1509 = vmul.f32 %v709, %v1352
        %v1510 = vmul.f32 %v710, %v1356
        %v1511 = vmul.f32 %v711, %v1352
        %v1512 = vmul.f32 %v712, %v1356
        %v1513 = vmul.f32 %v713, %v1352
        %v1514 = vmul.f32 %v714, %v1356
        %v1515 = vmul.f32 %v715, %v1352
        %v1516 = vmul.f32 %v716, %v1356
        %v1517 = vmul.f32 %v717, %v1360
        %v1518 = vmul.f32 %v718, %v1364
        %v1519 = vmul.f32 %v719, %v1360
        %v1520 = vmul.f32 %v720, %v1364
        %v1521 = vmul.f32 %v721, %v1360
        %v1522 = vmul.f32 %v722, %v1364
        %v1523 = vmul.f32 %v723, %v1360
        %v1524 = vmul.f32 %v724, %v1364
        %v1525 = vmul.f32 %v725, %v1368
        %v1526 = vmul.f32 %v726, %v1372
        %v1527 = vmul.f32 %v727, %v1368
        %v1528 = vmul.f32 %v728, %v1372
        %v1529 = vmul.f32 %v729, %v1368
        %v1530 = vmul.f32 %v730, %v1372
        %v1531 = vmul.f32 %v731, %v1368
        %v1532 = vmul.f32 %v732, %v1372
        %v1533 = vmul.f32 %v733, %v1376
        %v1534 = vmul.f32 %v734, %v1380
        %v1535 = vmul.f32 %v735, %v1376
        %v1536 = vmul.f32 %v736, %v1380
        %v1537 = vmul.f32 %v737, %v1376
        %v1538 = vmul.f32 %v738, %v1380
        %v1539 = vmul.f32 %v739, %v1376
        %v1540 = vmul.f32 %v740, %v1380
        %v1541 = vmul.f32 %v741, %v1384
        %v1542 = vmul.f32 %v742, %v1388
        %v1543 = vmul.f32 %v743, %v1384
        %v1544 = vmul.f32 %v744, %v1388
        %v1545 = vmul.f32 %v745, %v1384
        %v1546 = vmul.f32 %v746, %v1388
        %v1547 = vmul.f32 %v747, %v1384
        %v1548 = vmul.f32 %v748, %v1388
        %v1549 = vmul.f32 %v749, %v1392
        %v1550 = vmul.f32 %v750, %v1396
        %v1551 = vmul.f32 %v751, %v1392
        %v1552 = vmul.f32 %v752, %v1396
        %v1553 = vmul.f32 %v753, %v1392
        %v1554 = vmul.f32 %v754, %v1396
        %v1555 = vmul.f32 %v755, %v1392
        %v1556 = vmul.f32 %v756, %v1396
        %v1557 = vmul.f32 %v757, %v1400
        %v1558 = vmul.f32 %v758, %v1404
        %v1559 = vmul.f32 %v759, %v1400
        %v1560 = vmul.f32 %v760, %v1404
        %v1561 = vmul.f32 %v761, %v1400
        %v1562 = vmul.f32 %v762, %v1404
        %v1563 = vmul.f32 %v763, %v1400
        %v1564 = vmul.f32 %v764, %v1404
        %v1565 = vmul.f32 %v765, %v1408
        %v1566 = vmul.f32 %v766, %v1412
        %v1567 = vmul.f32 %v767, %v1408
        %v1568 = vmul.f32 %v768, %v1412
        %v1569 = vmul.f32 %v769, %v1408
        %v1570 = vmul.f32 %v770, %v1412
        %v1571 = vmul.f32 %v771, %v1408
        %v1572 = vmul.f32 %v772, %v1412
        %v1573 = vmul.f32 %v773, %v1416
        %v1574 = vmul.f32 %v774, %v1420
        %v1575 = vmul.f32 %v775, %v1416
        %v1576 = vmul.f32 %v776, %v1420
        %v1577 = vmul.f32 %v777, %v1416
        %v1578 = vmul.f32 %v778, %v1420
        %v1579 = vmul.f32 %v779, %v1416
        %v1580 = vmul.f32 %v780, %v1420
        %v1581 = vmul.f32 %v781, %v1424
        %v1582 = vmul.f32 %v782, %v1428
        %v1583 = vmul.f32 %v783, %v1424
        %v1584 = vmul.f32 %v784, %v1428
        %v1585 = vmul.f32 %v785, %v1424
        %v1586 = vmul.f32 %v786, %v1428
        %v1587 = vmul.f32 %v787, %v1424
        %v1588 = vmul.f32 %v788, %v1428
        %v1589 = vmul.f32 %v789, %v1432
        %v1590 = vmul.f32 %v790, %v1436
        %v1591 = vmul.f32 %v791, %v1432
        %v1592 = vmul.f32 %v792, %v1436
        %v1593 = vmul.f32 %v793, %v1432
        %v1594 = vmul.f32 %v794, %v1436
        %v1595 = vmul.f32 %v795, %v1432
        %v1596 = vmul.f32 %v796, %v1436
        %v1597 = vmul.f32 %v797, %v1440
        %v1598 = vmul.f32 %v798, %v1444
        %v1599 = vmul.f32 %v799, %v1440
        %v1600 = vmul.f32 %v800, %v1444
        %v1601 = vmul.f32 %v801, %v1440
        %v1602 = vmul.f32 %v802, %v1444
        %v1603 = vmul.f32 %v803, %v1440
        %v1604 = vmul.f32 %v804, %v1444
        %v1605 = vmul.f32 %v805, %v1448
        %v1606 = vmul.f32 %v806, %v1452
        %v1607 = vmul.f32 %v807, %v1448
        %v1608 = vmul.f32 %v808, %v1452
        %v1609 = vmul.f32 %v809, %v1448
        %v1610 = vmul.f32 %v810, %v1452
        %v1611 = vmul.f32 %v811, %v1448
        %v1612 = vmul.f32 %v812, %v1452
        %v1613 = vmul.f32 %v813, %v1456
        %v1614 = vmul.f32 %v814, %v1460
        %v1615 = vmul.f32 %v815, %v1456
        %v1616 = vmul.f32 %v816, %v1460
        %v1617 = vmul.f32 %v817, %v1456
        %v1618 = vmul.f32 %v818, %v1460
        %v1619 = vmul.f32 %v819, %v1456
        %v1620 = vmul.f32 %v820, %v1460
        %v1621 = vmul.f32 %v821, %v1464
        %v1622 = vmul.f32 %v822, %v1468
        %v1623 = vmul.f32 %v823, %v1464
        %v1624 = vmul.f32 %v824, %v1468
        %v1625 = vmul.f32 %v825, %v1464
        %v1626 = vmul.f32 %v826, %v1468
        %v1627 = vmul.f32 %v827, %v1464
        %v1628 = vmul.f32 %v828, %v1468
        %v1629 = vmul.f32 %v829, %v1472
        %v1630 = vmul.f32 %v830, %v1476
        %v1631 = vmul.f32 %v831, %v1472
        %v1632 = vmul.f32 %v832, %v1476
        %v1633 = vmul.f32 %v833, %v1472
        %v1634 = vmul.f32 %v834, %v1476
        %v1635 = vmul.f32 %v835, %v1472
        %v1636 = vmul.f32 %v836, %v1476
        %v1641 = vcombine.low %v1237, %v1238
        %v1642 = vcombine.high %v1237, %v1238
        %v1644 = vunpack.c.l.s4 1966171168
        %v1645 = vunpack.c.0.s8 %v1644
        %v1646 = vlaneseq
        %v1647 = vshrl.u32 %v1646, 7
        %v1648 = vsub.s32 %v1645, %v1647
        %v1649 = vrot.slane %v1641, %v1648
        %v1651 = vunpack.c.l.s4 1966171168
        %v1652 = vunpack.c.0.s8 %v1651
        %v1653 = vlaneseq
        %v1654 = vshrl.u32 %v1653, 7
        %v1655 = vsub.s32 %v1652, %v1654
        %v1656 = vrot.slane %v1642, %v1655
        %v1657 = vcombine.high %v1649, %v1649
        %v1658 = vcombine.high %v1656, %v1656
        %v1660 = vunpack.c.l.s4 1966171168
        %v1661 = vunpack.c.0.s8 %v1660
        %v1662 = vlaneseq
        %v1663 = vshrl.u32 %v1662, 7
        %v1664 = vsub.s32 %v1661, %v1663
        %v1665 = vrot.slane %v1649, %v1664
        %v1667 = vunpack.c.l.s4 1966171168
        %v1668 = vunpack.c.0.s8 %v1667
        %v1669 = vlaneseq
        %v1670 = vshrl.u32 %v1669, 7
        %v1671 = vsub.s32 %v1668, %v1670
        %v1672 = vrot.slane %v1656, %v1671
        %v1674 = vunpack.c.l.s4 1966171168
        %v1675 = vunpack.c.0.s8 %v1674
        %v1676 = vlaneseq
        %v1677 = vshrl.u32 %v1676, 7
        %v1678 = vsub.s32 %v1675, %v1677
        %v1679 = vrot.slane %v1657, %v1678
        %v1681 = vunpack.c.l.s4 1966171168
        %v1682 = vunpack.c.0.s8 %v1681
        %v1683 = vlaneseq
        %v1684 = vshrl.u32 %v1683, 7
        %v1685 = vsub.s32 %v1682, %v1684
        %v1686 = vrot.slane %v1658, %v1685
        %v1687 = vcombine.high %v1665, %v1665
        %v1688 = vcombine.high %v1672, %v1672
        %v1689 = vcombine.high %v1679, %v1679
        %v1690 = vcombine.high %v1686, %v1686
        %v1691 = vcombine.low %v1239, %v1240
        %v1692 = vcombine.high %v1239, %v1240
        %v1694 = vunpack.c.l.s4 1966171168
        %v1695 = vunpack.c.0.s8 %v1694
        %v1696 = vlaneseq
        %v1697 = vshrl.u32 %v1696, 7
        %v1698 = vsub.s32 %v1695, %v1697
        %v1699 = vrot.slane %v1691, %v1698
        %v1701 = vunpack.c.l.s4 1966171168
        %v1702 = vunpack.c.0.s8 %v1701
        %v1703 = vlaneseq
        %v1704 = vshrl.u32 %v1703, 7
        %v1705 = vsub.s32 %v1702, %v1704
        %v1706 = vrot.slane %v1692, %v1705
        %v1707 = vcombine.high %v1699, %v1699
        %v1708 = vcombine.high %v1706, %v1706
        %v1710 = vunpack.c.l.s4 1966171168
        %v1711 = vunpack.c.0.s8 %v1710
        %v1712 = vlaneseq
        %v1713 = vshrl.u32 %v1712, 7
        %v1714 = vsub.s32 %v1711, %v1713
        %v1715 = vrot.slane %v1699, %v1714
        %v1717 = vunpack.c.l.s4 1966171168
        %v1718 = vunpack.c.0.s8 %v1717
        %v1719 = vlaneseq
        %v1720 = vshrl.u32 %v1719, 7
        %v1721 = vsub.s32 %v1718, %v1720
        %v1722 = vrot.slane %v1706, %v1721
        %v1724 = vunpack.c.l.s4 1966171168
        %v1725 = vunpack.c.0.s8 %v1724
        %v1726 = vlaneseq
        %v1727 = vshrl.u32 %v1726, 7
        %v1728 = vsub.s32 %v1725, %v1727
        %v1729 = vrot.slane %v1707, %v1728
        %v1731 = vunpack.c.l.s4 1966171168
        %v1732 = vunpack.c.0.s8 %v1731
        %v1733 = vlaneseq
        %v1734 = vshrl.u32 %v1733, 7
        %v1735 = vsub.s32 %v1732, %v1734
        %v1736 = vrot.slane %v1708, %v1735
        %v1737 = vcombine.high %v1715, %v1715
        %v1738 = vcombine.high %v1722, %v1722
        %v1739 = vcombine.high %v1729, %v1729
        %v1740 = vcombine.high %v1736, %v1736
        %v1741 = vlaneseq
        %v1742 = vshrl.u32 %v1741, 7
        %v1743 = vsub.s32 0, %v1742
        %v1744 = vrot.slane %v1665, %v1743
        %v1745 = vlaneseq
        %v1746 = vshrl.u32 %v1745, 7
        %v1747 = vsub.s32 1, %v1746
        %v1748 = vrot.slane %v1665, %v1747
        %v1749 = vlaneseq
        %v1750 = vshrl.u32 %v1749, 7
        %v1751 = vsub.s32 0, %v1750
        %v1752 = vrot.slane %v1679, %v1751
        %v1753 = vlaneseq
        %v1754 = vshrl.u32 %v1753, 7
        %v1755 = vsub.s32 1, %v1754
        %v1756 = vrot.slane %v1679, %v1755
        %v1757 = vlaneseq
        %v1758 = vshrl.u32 %v1757, 7
        %v1759 = vsub.s32 0, %v1758
        %v1760 = vrot.slane %v1687, %v1759
        %v1761 = vlaneseq
        %v1762 = vshrl.u32 %v1761, 7
        %v1763 = vsub.s32 1, %v1762
        %v1764 = vrot.slane %v1687, %v1763
        %v1765 = vlaneseq
        %v1766 = vshrl.u32 %v1765, 7
        %v1767 = vsub.s32 0, %v1766
        %v1768 = vrot.slane %v1689, %v1767
        %v1769 = vlaneseq
        %v1770 = vshrl.u32 %v1769, 7
        %v1771 = vsub.s32 1, %v1770
        %v1772 = vrot.slane %v1689, %v1771
        %v1773 = vlaneseq
        %v1774 = vshrl.u32 %v1773, 7
        %v1775 = vsub.s32 0, %v1774
        %v1776 = vrot.slane %v1672, %v1775
        %v1777 = vlaneseq
        %v1778 = vshrl.u32 %v1777, 7
        %v1779 = vsub.s32 1, %v1778
        %v1780 = vrot.slane %v1672, %v1779
        %v1781 = vlaneseq
        %v1782 = vshrl.u32 %v1781, 7
        %v1783 = vsub.s32 0, %v1782
        %v1784 = vrot.slane %v1686, %v1783
        %v1785 = vlaneseq
        %v1786 = vshrl.u32 %v1785, 7
        %v1787 = vsub.s32 1, %v1786
        %v1788 = vrot.slane %v1686, %v1787
        %v1789 = vlaneseq
        %v1790 = vshrl.u32 %v1789, 7
        %v1791 = vsub.s32 0, %v1790
        %v1792 = vrot.slane %v1688, %v1791
        %v1793 = vlaneseq
        %v1794 = vshrl.u32 %v1793, 7
        %v1795 = vsub.s32 1, %v1794
        %v1796 = vrot.slane %v1688, %v1795
        %v1797 = vlaneseq
        %v1798 = vshrl.u32 %v1797, 7
        %v1799 = vsub.s32 0, %v1798
        %v1800 = vrot.slane %v1690, %v1799
        %v1801 = vlaneseq
        %v1802 = vshrl.u32 %v1801, 7
        %v1803 = vsub.s32 1, %v1802
        %v1804 = vrot.slane %v1690, %v1803
        %v1805 = vlaneseq
        %v1806 = vshrl.u32 %v1805, 7
        %v1807 = vsub.s32 0, %v1806
        %v1808 = vrot.slane %v1715, %v1807
        %v1809 = vlaneseq
        %v1810 = vshrl.u32 %v1809, 7
        %v1811 = vsub.s32 1, %v1810
        %v1812 = vrot.slane %v1715, %v1811
        %v1813 = vlaneseq
        %v1814 = vshrl.u32 %v1813, 7
        %v1815 = vsub.s32 0, %v1814
        %v1816 = vrot.slane %v1729, %v1815
        %v1817 = vlaneseq
        %v1818 = vshrl.u32 %v1817, 7
        %v1819 = vsub.s32 1, %v1818
        %v1820 = vrot.slane %v1729, %v1819
        %v1821 = vlaneseq
        %v1822 = vshrl.u32 %v1821, 7
        %v1823 = vsub.s32 0, %v1822
        %v1824 = vrot.slane %v1737, %v1823
        %v1825 = vlaneseq
        %v1826 = vshrl.u32 %v1825, 7
        %v1827 = vsub.s32 1, %v1826
        %v1828 = vrot.slane %v1737, %v1827
        %v1829 = vlaneseq
        %v1830 = vshrl.u32 %v1829, 7
        %v1831 = vsub.s32 0, %v1830
        %v1832 = vrot.slane %v1739, %v1831
        %v1833 = vlaneseq
        %v1834 = vshrl.u32 %v1833, 7
        %v1835 = vsub.s32 1, %v1834
        %v1836 = vrot.slane %v1739, %v1835
        %v1837 = vlaneseq
        %v1838 = vshrl.u32 %v1837, 7
        %v1839 = vsub.s32 0, %v1838
        %v1840 = vrot.slane %v1722, %v1839
        %v1841 = vlaneseq
        %v1842 = vshrl.u32 %v1841, 7
        %v1843 = vsub.s32 1, %v1842
        %v1844 = vrot.slane %v1722, %v1843
        %v1845 = vlaneseq
        %v1846 = vshrl.u32 %v1845, 7
        %v1847 = vsub.s32 0, %v1846
        %v1848 = vrot.slane %v1736, %v1847
        %v1849 = vlaneseq
        %v1850 = vshrl.u32 %v1849, 7
        %v1851 = vsub.s32 1, %v1850
        %v1852 = vrot.slane %v1736, %v1851
        %v1853 = vlaneseq
        %v1854 = vshrl.u32 %v1853, 7
        %v1855 = vsub.s32 0, %v1854
        %v1856 = vrot.slane %v1738, %v1855
        %v1857 = vlaneseq
        %v1858 = vshrl.u32 %v1857, 7
        %v1859 = vsub.s32 1, %v1858
        %v1860 = vrot.slane %v1738, %v1859
        %v1861 = vlaneseq
        %v1862 = vshrl.u32 %v1861, 7
        %v1863 = vsub.s32 0, %v1862
        %v1864 = vrot.slane %v1740, %v1863
        %v1865 = vlaneseq
        %v1866 = vshrl.u32 %v1865, 7
        %v1867 = vsub.s32 1, %v1866
        %v1868 = vrot.slane %v1740, %v1867
        %v1901 = vadd.f32 %v1509, %v1744
        %v1902 = vadd.f32 %v1510, %v1748
        %v1903 = vadd.f32 %v1511, %v1744
        %v1904 = vadd.f32 %v1512, %v1748
        %v1905 = vadd.f32 %v1513, %v1744
        %v1906 = vadd.f32 %v1514, %v1748
        %v1907 = vadd.f32 %v1515, %v1744
        %v1908 = vadd.f32 %v1516, %v1748
        %v1909 = vadd.f32 %v1517, %v1752
        %v1910 = vadd.f32 %v1518, %v1756
        %v1911 = vadd.f32 %v1519, %v1752
        %v1912 = vadd.f32 %v1520, %v1756
        %v1913 = vadd.f32 %v1521, %v1752
        %v1914 = vadd.f32 %v1522, %v1756
        %v1915 = vadd.f32 %v1523, %v1752
        %v1916 = vadd.f32 %v1524, %v1756
        %v1917 = vadd.f32 %v1525, %v1760
        %v1918 = vadd.f32 %v1526, %v1764
        %v1919 = vadd.f32 %v1527, %v1760
        %v1920 = vadd.f32 %v1528, %v1764
        %v1921 = vadd.f32 %v1529, %v1760
        %v1922 = vadd.f32 %v1530, %v1764
        %v1923 = vadd.f32 %v1531, %v1760
        %v1924 = vadd.f32 %v1532, %v1764
        %v1925 = vadd.f32 %v1533, %v1768
        %v1926 = vadd.f32 %v1534, %v1772
        %v1927 = vadd.f32 %v1535, %v1768
        %v1928 = vadd.f32 %v1536, %v1772
        %v1929 = vadd.f32 %v1537, %v1768
        %v1930 = vadd.f32 %v1538, %v1772
        %v1931 = vadd.f32 %v1539, %v1768
        %v1932 = vadd.f32 %v1540, %v1772
        %v1933 = vadd.f32 %v1541, %v1776
        %v1934 = vadd.f32 %v1542, %v1780
        %v1935 = vadd.f32 %v1543, %v1776
        %v1936 = vadd.f32 %v1544, %v1780
        %v1937 = vadd.f32 %v1545, %v1776
        %v1938 = vadd.f32 %v1546, %v1780
        %v1939 = vadd.f32 %v1547, %v1776
        %v1940 = vadd.f32 %v1548, %v1780
        %v1941 = vadd.f32 %v1549, %v1784
        %v1942 = vadd.f32 %v1550, %v1788
        %v1943 = vadd.f32 %v1551, %v1784
        %v1944 = vadd.f32 %v1552, %v1788
        %v1945 = vadd.f32 %v1553, %v1784
        %v1946 = vadd.f32 %v1554, %v1788
        %v1947 = vadd.f32 %v1555, %v1784
        %v1948 = vadd.f32 %v1556, %v1788
        %v1949 = vadd.f32 %v1557, %v1792
        %v1950 = vadd.f32 %v1558, %v1796
        %v1951 = vadd.f32 %v1559, %v1792
        %v1952 = vadd.f32 %v1560, %v1796
        %v1953 = vadd.f32 %v1561, %v1792
        %v1954 = vadd.f32 %v1562, %v1796
        %v1955 = vadd.f32 %v1563, %v1792
        %v1956 = vadd.f32 %v1564, %v1796
        %v1957 = vadd.f32 %v1565, %v1800
        %v1958 = vadd.f32 %v1566, %v1804
        %v1959 = vadd.f32 %v1567, %v1800
        %v1960 = vadd.f32 %v1568, %v1804
        %v1961 = vadd.f32 %v1569, %v1800
        %v1962 = vadd.f32 %v1570, %v1804
        %v1963 = vadd.f32 %v1571, %v1800
        %v1964 = vadd.f32 %v1572, %v1804
        %v1965 = vadd.f32 %v1573, %v1808
        %v1966 = vadd.f32 %v1574, %v1812
        %v1967 = vadd.f32 %v1575, %v1808
        %v1968 = vadd.f32 %v1576, %v1812
        %v1969 = vadd.f32 %v1577, %v1808
        %v1970 = vadd.f32 %v1578, %v1812
        %v1971 = vadd.f32 %v1579, %v1808
        %v1972 = vadd.f32 %v1580, %v1812
        %v1973 = vadd.f32 %v1581, %v1816
        %v1974 = vadd.f32 %v1582, %v1820
        %v1975 = vadd.f32 %v1583, %v1816
        %v1976 = vadd.f32 %v1584, %v1820
        %v1977 = vadd.f32 %v1585, %v1816
        %v1978 = vadd.f32 %v1586, %v1820
        %v1979 = vadd.f32 %v1587, %v1816
        %v1980 = vadd.f32 %v1588, %v1820
        %v1981 = vadd.f32 %v1589, %v1824
        %v1982 = vadd.f32 %v1590, %v1828
        %v1983 = vadd.f32 %v1591, %v1824
        %v1984 = vadd.f32 %v1592, %v1828
        %v1985 = vadd.f32 %v1593, %v1824
        %v1986 = vadd.f32 %v1594, %v1828
        %v1987 = vadd.f32 %v1595, %v1824
        %v1988 = vadd.f32 %v1596, %v1828
        %v1989 = vadd.f32 %v1597, %v1832
        %v1990 = vadd.f32 %v1598, %v1836
        %v1991 = vadd.f32 %v1599, %v1832
        %v1992 = vadd.f32 %v1600, %v1836
        %v1993 = vadd.f32 %v1601, %v1832
        %v1994 = vadd.f32 %v1602, %v1836
        %v1995 = vadd.f32 %v1603, %v1832
        %v1996 = vadd.f32 %v1604, %v1836
        %v1997 = vadd.f32 %v1605, %v1840
        %v1998 = vadd.f32 %v1606, %v1844
        %v1999 = vadd.f32 %v1607, %v1840
        %v2000 = vadd.f32 %v1608, %v1844
        %v2001 = vadd.f32 %v1609, %v1840
        %v2002 = vadd.f32 %v1610, %v1844
        %v2003 = vadd.f32 %v1611, %v1840
        %v2004 = vadd.f32 %v1612, %v1844
        %v2005 = vadd.f32 %v1613, %v1848
        %v2006 = vadd.f32 %v1614, %v1852
        %v2007 = vadd.f32 %v1615, %v1848
        %v2008 = vadd.f32 %v1616, %v1852
        %v2009 = vadd.f32 %v1617, %v1848
        %v2010 = vadd.f32 %v1618, %v1852
        %v2011 = vadd.f32 %v1619, %v1848
        %v2012 = vadd.f32 %v1620, %v1852
        %v2013 = vadd.f32 %v1621, %v1856
        %v2014 = vadd.f32 %v1622, %v1860
        %v2015 = vadd.f32 %v1623, %v1856
        %v2016 = vadd.f32 %v1624, %v1860
        %v2017 = vadd.f32 %v1625, %v1856
        %v2018 = vadd.f32 %v1626, %v1860
        %v2019 = vadd.f32 %v1627, %v1856
        %v2020 = vadd.f32 %v1628, %v1860
        %v2021 = vadd.f32 %v1629, %v1864
        %v2022 = vadd.f32 %v1630, %v1868
        %v2023 = vadd.f32 %v1631, %v1864
        %v2024 = vadd.f32 %v1632, %v1868
        %v2025 = vadd.f32 %v1633, %v1864
        %v2026 = vadd.f32 %v1634, %v1868
        %v2027 = vadd.f32 %v1635, %v1864
        %v2028 = vadd.f32 %v1636, %v1868
        %v2029 = vpack.c.bf16 %v1903, %v1901
        %v2030 = vpack.c.bf16 %v1904, %v1902
        %v2031 = vpack.c.bf16 %v1907, %v1905
        %v2032 = vpack.c.bf16 %v1908, %v1906
        %v2033 = vpack.c.bf16 %v1911, %v1909
        %v2034 = vpack.c.bf16 %v1912, %v1910
        %v2035 = vpack.c.bf16 %v1915, %v1913
        %v2036 = vpack.c.bf16 %v1916, %v1914
        %v2037 = vpack.c.bf16 %v1919, %v1917
        %v2038 = vpack.c.bf16 %v1920, %v1918
        %v2039 = vpack.c.bf16 %v1923, %v1921
        %v2040 = vpack.c.bf16 %v1924, %v1922
        %v2041 = vpack.c.bf16 %v1927, %v1925
        %v2042 = vpack.c.bf16 %v1928, %v1926
        %v2043 = vpack.c.bf16 %v1931, %v1929
        %v2044 = vpack.c.bf16 %v1932, %v1930
        %v2045 = vpack.c.bf16 %v1935, %v1933
        %v2046 = vpack.c.bf16 %v1936, %v1934
        %v2047 = vpack.c.bf16 %v1939, %v1937
        %v2048 = vpack.c.bf16 %v1940, %v1938
        %v2049 = vpack.c.bf16 %v1943, %v1941
        %v2050 = vpack.c.bf16 %v1944, %v1942
        %v2051 = vpack.c.bf16 %v1947, %v1945
        %v2052 = vpack.c.bf16 %v1948, %v1946
        %v2053 = vpack.c.bf16 %v1951, %v1949
        %v2054 = vpack.c.bf16 %v1952, %v1950
        %v2055 = vpack.c.bf16 %v1955, %v1953
        %v2056 = vpack.c.bf16 %v1956, %v1954
        %v2057 = vpack.c.bf16 %v1959, %v1957
        %v2058 = vpack.c.bf16 %v1960, %v1958
        %v2059 = vpack.c.bf16 %v1963, %v1961
        %v2060 = vpack.c.bf16 %v1964, %v1962
        %v2061 = vpack.c.bf16 %v1967, %v1965
        %v2062 = vpack.c.bf16 %v1968, %v1966
        %v2063 = vpack.c.bf16 %v1971, %v1969
        %v2064 = vpack.c.bf16 %v1972, %v1970
        %v2065 = vpack.c.bf16 %v1975, %v1973
        %v2066 = vpack.c.bf16 %v1976, %v1974
        %v2067 = vpack.c.bf16 %v1979, %v1977
        %v2068 = vpack.c.bf16 %v1980, %v1978
        %v2069 = vpack.c.bf16 %v1983, %v1981
        %v2070 = vpack.c.bf16 %v1984, %v1982
        %v2071 = vpack.c.bf16 %v1987, %v1985
        %v2072 = vpack.c.bf16 %v1988, %v1986
        %v2073 = vpack.c.bf16 %v1991, %v1989
        %v2074 = vpack.c.bf16 %v1992, %v1990
        %v2075 = vpack.c.bf16 %v1995, %v1993
        %v2076 = vpack.c.bf16 %v1996, %v1994
        %v2077 = vpack.c.bf16 %v1999, %v1997
        %v2078 = vpack.c.bf16 %v2000, %v1998
        %v2079 = vpack.c.bf16 %v2003, %v2001
        %v2080 = vpack.c.bf16 %v2004, %v2002
        %v2081 = vpack.c.bf16 %v2007, %v2005
        %v2082 = vpack.c.bf16 %v2008, %v2006
        %v2083 = vpack.c.bf16 %v2011, %v2009
        %v2084 = vpack.c.bf16 %v2012, %v2010
        %v2085 = vpack.c.bf16 %v2015, %v2013
        %v2086 = vpack.c.bf16 %v2016, %v2014
        %v2087 = vpack.c.bf16 %v2019, %v2017
        %v2088 = vpack.c.bf16 %v2020, %v2018
        %v2089 = vpack.c.bf16 %v2023, %v2021
        %v2090 = vpack.c.bf16 %v2024, %v2022
        %v2091 = vpack.c.bf16 %v2027, %v2025
        %v2092 = vpack.c.bf16 %v2028, %v2026
        %v2097 = vcombine.low %v1229, %v1230
        %v2098 = vcombine.high %v1229, %v1230
        %v2100 = vunpack.c.l.s4 1966171168
        %v2101 = vunpack.c.0.s8 %v2100
        %v2102 = vlaneseq
        %v2103 = vshrl.u32 %v2102, 7
        %v2104 = vsub.s32 %v2101, %v2103
        %v2105 = vrot.slane %v2097, %v2104
        %v2107 = vunpack.c.l.s4 1966171168
        %v2108 = vunpack.c.0.s8 %v2107
        %v2109 = vlaneseq
        %v2110 = vshrl.u32 %v2109, 7
        %v2111 = vsub.s32 %v2108, %v2110
        %v2112 = vrot.slane %v2098, %v2111
        %v2113 = vcombine.high %v2105, %v2105
        %v2114 = vcombine.high %v2112, %v2112
        %v2116 = vunpack.c.l.s4 1966171168
        %v2117 = vunpack.c.0.s8 %v2116
        %v2118 = vlaneseq
        %v2119 = vshrl.u32 %v2118, 7
        %v2120 = vsub.s32 %v2117, %v2119
        %v2121 = vrot.slane %v2105, %v2120
        %v2123 = vunpack.c.l.s4 1966171168
        %v2124 = vunpack.c.0.s8 %v2123
        %v2125 = vlaneseq
        %v2126 = vshrl.u32 %v2125, 7
        %v2127 = vsub.s32 %v2124, %v2126
        %v2128 = vrot.slane %v2112, %v2127
        %v2130 = vunpack.c.l.s4 1966171168
        %v2131 = vunpack.c.0.s8 %v2130
        %v2132 = vlaneseq
        %v2133 = vshrl.u32 %v2132, 7
        %v2134 = vsub.s32 %v2131, %v2133
        %v2135 = vrot.slane %v2113, %v2134
        %v2137 = vunpack.c.l.s4 1966171168
        %v2138 = vunpack.c.0.s8 %v2137
        %v2139 = vlaneseq
        %v2140 = vshrl.u32 %v2139, 7
        %v2141 = vsub.s32 %v2138, %v2140
        %v2142 = vrot.slane %v2114, %v2141
        %v2143 = vcombine.high %v2121, %v2121
        %v2144 = vcombine.high %v2128, %v2128
        %v2145 = vcombine.high %v2135, %v2135
        %v2146 = vcombine.high %v2142, %v2142
        %v2147 = vcombine.low %v1231, %v1232
        %v2148 = vcombine.high %v1231, %v1232
        %v2150 = vunpack.c.l.s4 1966171168
        %v2151 = vunpack.c.0.s8 %v2150
        %v2152 = vlaneseq
        %v2153 = vshrl.u32 %v2152, 7
        %v2154 = vsub.s32 %v2151, %v2153
        %v2155 = vrot.slane %v2147, %v2154
        %v2157 = vunpack.c.l.s4 1966171168
        %v2158 = vunpack.c.0.s8 %v2157
        %v2159 = vlaneseq
        %v2160 = vshrl.u32 %v2159, 7
        %v2161 = vsub.s32 %v2158, %v2160
        %v2162 = vrot.slane %v2148, %v2161
        %v2163 = vcombine.high %v2155, %v2155
        %v2164 = vcombine.high %v2162, %v2162
        %v2166 = vunpack.c.l.s4 1966171168
        %v2167 = vunpack.c.0.s8 %v2166
        %v2168 = vlaneseq
        %v2169 = vshrl.u32 %v2168, 7
        %v2170 = vsub.s32 %v2167, %v2169
        %v2171 = vrot.slane %v2155, %v2170
        %v2173 = vunpack.c.l.s4 1966171168
        %v2174 = vunpack.c.0.s8 %v2173
        %v2175 = vlaneseq
        %v2176 = vshrl.u32 %v2175, 7
        %v2177 = vsub.s32 %v2174, %v2176
        %v2178 = vrot.slane %v2162, %v2177
        %v2180 = vunpack.c.l.s4 1966171168
        %v2181 = vunpack.c.0.s8 %v2180
        %v2182 = vlaneseq
        %v2183 = vshrl.u32 %v2182, 7
        %v2184 = vsub.s32 %v2181, %v2183
        %v2185 = vrot.slane %v2163, %v2184
        %v2187 = vunpack.c.l.s4 1966171168
        %v2188 = vunpack.c.0.s8 %v2187
        %v2189 = vlaneseq
        %v2190 = vshrl.u32 %v2189, 7
        %v2191 = vsub.s32 %v2188, %v2190
        %v2192 = vrot.slane %v2164, %v2191
        %v2193 = vcombine.high %v2171, %v2171
        %v2194 = vcombine.high %v2178, %v2178
        %v2195 = vcombine.high %v2185, %v2185
        %v2196 = vcombine.high %v2192, %v2192
        %v2197 = vlaneseq
        %v2198 = vshrl.u32 %v2197, 7
        %v2199 = vsub.s32 0, %v2198
        %v2200 = vrot.slane %v2121, %v2199
        %v2201 = vlaneseq
        %v2202 = vshrl.u32 %v2201, 7
        %v2203 = vsub.s32 1, %v2202
        %v2204 = vrot.slane %v2121, %v2203
        %v2205 = vlaneseq
        %v2206 = vshrl.u32 %v2205, 7
        %v2207 = vsub.s32 0, %v2206
        %v2208 = vrot.slane %v2135, %v2207
        %v2209 = vlaneseq
        %v2210 = vshrl.u32 %v2209, 7
        %v2211 = vsub.s32 1, %v2210
        %v2212 = vrot.slane %v2135, %v2211
        %v2213 = vlaneseq
        %v2214 = vshrl.u32 %v2213, 7
        %v2215 = vsub.s32 0, %v2214
        %v2216 = vrot.slane %v2143, %v2215
        %v2217 = vlaneseq
        %v2218 = vshrl.u32 %v2217, 7
        %v2219 = vsub.s32 1, %v2218
        %v2220 = vrot.slane %v2143, %v2219
        %v2221 = vlaneseq
        %v2222 = vshrl.u32 %v2221, 7
        %v2223 = vsub.s32 0, %v2222
        %v2224 = vrot.slane %v2145, %v2223
        %v2225 = vlaneseq
        %v2226 = vshrl.u32 %v2225, 7
        %v2227 = vsub.s32 1, %v2226
        %v2228 = vrot.slane %v2145, %v2227
        %v2229 = vlaneseq
        %v2230 = vshrl.u32 %v2229, 7
        %v2231 = vsub.s32 0, %v2230
        %v2232 = vrot.slane %v2128, %v2231
        %v2233 = vlaneseq
        %v2234 = vshrl.u32 %v2233, 7
        %v2235 = vsub.s32 1, %v2234
        %v2236 = vrot.slane %v2128, %v2235
        %v2237 = vlaneseq
        %v2238 = vshrl.u32 %v2237, 7
        %v2239 = vsub.s32 0, %v2238
        %v2240 = vrot.slane %v2142, %v2239
        %v2241 = vlaneseq
        %v2242 = vshrl.u32 %v2241, 7
        %v2243 = vsub.s32 1, %v2242
        %v2244 = vrot.slane %v2142, %v2243
        %v2245 = vlaneseq
        %v2246 = vshrl.u32 %v2245, 7
        %v2247 = vsub.s32 0, %v2246
        %v2248 = vrot.slane %v2144, %v2247
        %v2249 = vlaneseq
        %v2250 = vshrl.u32 %v2249, 7
        %v2251 = vsub.s32 1, %v2250
        %v2252 = vrot.slane %v2144, %v2251
        %v2253 = vlaneseq
        %v2254 = vshrl.u32 %v2253, 7
        %v2255 = vsub.s32 0, %v2254
        %v2256 = vrot.slane %v2146, %v2255
        %v2257 = vlaneseq
        %v2258 = vshrl.u32 %v2257, 7
        %v2259 = vsub.s32 1, %v2258
        %v2260 = vrot.slane %v2146, %v2259
        %v2261 = vlaneseq
        %v2262 = vshrl.u32 %v2261, 7
        %v2263 = vsub.s32 0, %v2262
        %v2264 = vrot.slane %v2171, %v2263
        %v2265 = vlaneseq
        %v2266 = vshrl.u32 %v2265, 7
        %v2267 = vsub.s32 1, %v2266
        %v2268 = vrot.slane %v2171, %v2267
        %v2269 = vlaneseq
        %v2270 = vshrl.u32 %v2269, 7
        %v2271 = vsub.s32 0, %v2270
        %v2272 = vrot.slane %v2185, %v2271
        %v2273 = vlaneseq
        %v2274 = vshrl.u32 %v2273, 7
        %v2275 = vsub.s32 1, %v2274
        %v2276 = vrot.slane %v2185, %v2275
        %v2277 = vlaneseq
        %v2278 = vshrl.u32 %v2277, 7
        %v2279 = vsub.s32 0, %v2278
        %v2280 = vrot.slane %v2193, %v2279
        %v2281 = vlaneseq
        %v2282 = vshrl.u32 %v2281, 7
        %v2283 = vsub.s32 1, %v2282
        %v2284 = vrot.slane %v2193, %v2283
        %v2285 = vlaneseq
        %v2286 = vshrl.u32 %v2285, 7
        %v2287 = vsub.s32 0, %v2286
        %v2288 = vrot.slane %v2195, %v2287
        %v2289 = vlaneseq
        %v2290 = vshrl.u32 %v2289, 7
        %v2291 = vsub.s32 1, %v2290
        %v2292 = vrot.slane %v2195, %v2291
        %v2293 = vlaneseq
        %v2294 = vshrl.u32 %v2293, 7
        %v2295 = vsub.s32 0, %v2294
        %v2296 = vrot.slane %v2178, %v2295
        %v2297 = vlaneseq
        %v2298 = vshrl.u32 %v2297, 7
        %v2299 = vsub.s32 1, %v2298
        %v2300 = vrot.slane %v2178, %v2299
        %v2301 = vlaneseq
        %v2302 = vshrl.u32 %v2301, 7
        %v2303 = vsub.s32 0, %v2302
        %v2304 = vrot.slane %v2192, %v2303
        %v2305 = vlaneseq
        %v2306 = vshrl.u32 %v2305, 7
        %v2307 = vsub.s32 1, %v2306
        %v2308 = vrot.slane %v2192, %v2307
        %v2309 = vlaneseq
        %v2310 = vshrl.u32 %v2309, 7
        %v2311 = vsub.s32 0, %v2310
        %v2312 = vrot.slane %v2194, %v2311
        %v2313 = vlaneseq
        %v2314 = vshrl.u32 %v2313, 7
        %v2315 = vsub.s32 1, %v2314
        %v2316 = vrot.slane %v2194, %v2315
        %v2317 = vlaneseq
        %v2318 = vshrl.u32 %v2317, 7
        %v2319 = vsub.s32 0, %v2318
        %v2320 = vrot.slane %v2196, %v2319
        %v2321 = vlaneseq
        %v2322 = vshrl.u32 %v2321, 7
        %v2323 = vsub.s32 1, %v2322
        %v2324 = vrot.slane %v2196, %v2323
        %v2357 = vmul.f32 %v1093, %v2200
        %v2358 = vmul.f32 %v1094, %v2204
        %v2359 = vmul.f32 %v1095, %v2200
        %v2360 = vmul.f32 %v1096, %v2204
        %v2361 = vmul.f32 %v1097, %v2200
        %v2362 = vmul.f32 %v1098, %v2204
        %v2363 = vmul.f32 %v1099, %v2200
        %v2364 = vmul.f32 %v1100, %v2204
        %v2365 = vmul.f32 %v1101, %v2208
        %v2366 = vmul.f32 %v1102, %v2212
        %v2367 = vmul.f32 %v1103, %v2208
        %v2368 = vmul.f32 %v1104, %v2212
        %v2369 = vmul.f32 %v1105, %v2208
        %v2370 = vmul.f32 %v1106, %v2212
        %v2371 = vmul.f32 %v1107, %v2208
        %v2372 = vmul.f32 %v1108, %v2212
        %v2373 = vmul.f32 %v1109, %v2216
        %v2374 = vmul.f32 %v1110, %v2220
        %v2375 = vmul.f32 %v1111, %v2216
        %v2376 = vmul.f32 %v1112, %v2220
        %v2377 = vmul.f32 %v1113, %v2216
        %v2378 = vmul.f32 %v1114, %v2220
        %v2379 = vmul.f32 %v1115, %v2216
        %v2380 = vmul.f32 %v1116, %v2220
        %v2381 = vmul.f32 %v1117, %v2224
        %v2382 = vmul.f32 %v1118, %v2228
        %v2383 = vmul.f32 %v1119, %v2224
        %v2384 = vmul.f32 %v1120, %v2228
        %v2385 = vmul.f32 %v1121, %v2224
        %v2386 = vmul.f32 %v1122, %v2228
        %v2387 = vmul.f32 %v1123, %v2224
        %v2388 = vmul.f32 %v1124, %v2228
        %v2389 = vmul.f32 %v1125, %v2232
        %v2390 = vmul.f32 %v1126, %v2236
        %v2391 = vmul.f32 %v1127, %v2232
        %v2392 = vmul.f32 %v1128, %v2236
        %v2393 = vmul.f32 %v1129, %v2232
        %v2394 = vmul.f32 %v1130, %v2236
        %v2395 = vmul.f32 %v1131, %v2232
        %v2396 = vmul.f32 %v1132, %v2236
        %v2397 = vmul.f32 %v1133, %v2240
        %v2398 = vmul.f32 %v1134, %v2244
        %v2399 = vmul.f32 %v1135, %v2240
        %v2400 = vmul.f32 %v1136, %v2244
        %v2401 = vmul.f32 %v1137, %v2240
        %v2402 = vmul.f32 %v1138, %v2244
        %v2403 = vmul.f32 %v1139, %v2240
        %v2404 = vmul.f32 %v1140, %v2244
        %v2405 = vmul.f32 %v1141, %v2248
        %v2406 = vmul.f32 %v1142, %v2252
        %v2407 = vmul.f32 %v1143, %v2248
        %v2408 = vmul.f32 %v1144, %v2252
        %v2409 = vmul.f32 %v1145, %v2248
        %v2410 = vmul.f32 %v1146, %v2252
        %v2411 = vmul.f32 %v1147, %v2248
        %v2412 = vmul.f32 %v1148, %v2252
        %v2413 = vmul.f32 %v1149, %v2256
        %v2414 = vmul.f32 %v1150, %v2260
        %v2415 = vmul.f32 %v1151, %v2256
        %v2416 = vmul.f32 %v1152, %v2260
        %v2417 = vmul.f32 %v1153, %v2256
        %v2418 = vmul.f32 %v1154, %v2260
        %v2419 = vmul.f32 %v1155, %v2256
        %v2420 = vmul.f32 %v1156, %v2260
        %v2421 = vmul.f32 %v1157, %v2264
        %v2422 = vmul.f32 %v1158, %v2268
        %v2423 = vmul.f32 %v1159, %v2264
        %v2424 = vmul.f32 %v1160, %v2268
        %v2425 = vmul.f32 %v1161, %v2264
        %v2426 = vmul.f32 %v1162, %v2268
        %v2427 = vmul.f32 %v1163, %v2264
        %v2428 = vmul.f32 %v1164, %v2268
        %v2429 = vmul.f32 %v1165, %v2272
        %v2430 = vmul.f32 %v1166, %v2276
        %v2431 = vmul.f32 %v1167, %v2272
        %v2432 = vmul.f32 %v1168, %v2276
        %v2433 = vmul.f32 %v1169, %v2272
        %v2434 = vmul.f32 %v1170, %v2276
        %v2435 = vmul.f32 %v1171, %v2272
        %v2436 = vmul.f32 %v1172, %v2276
        %v2437 = vmul.f32 %v1173, %v2280
        %v2438 = vmul.f32 %v1174, %v2284
        %v2439 = vmul.f32 %v1175, %v2280
        %v2440 = vmul.f32 %v1176, %v2284
        %v2441 = vmul.f32 %v1177, %v2280
        %v2442 = vmul.f32 %v1178, %v2284
        %v2443 = vmul.f32 %v1179, %v2280
        %v2444 = vmul.f32 %v1180, %v2284
        %v2445 = vmul.f32 %v1181, %v2288
        %v2446 = vmul.f32 %v1182, %v2292
        %v2447 = vmul.f32 %v1183, %v2288
        %v2448 = vmul.f32 %v1184, %v2292
        %v2449 = vmul.f32 %v1185, %v2288
        %v2450 = vmul.f32 %v1186, %v2292
        %v2451 = vmul.f32 %v1187, %v2288
        %v2452 = vmul.f32 %v1188, %v2292
        %v2453 = vmul.f32 %v1189, %v2296
        %v2454 = vmul.f32 %v1190, %v2300
        %v2455 = vmul.f32 %v1191, %v2296
        %v2456 = vmul.f32 %v1192, %v2300
        %v2457 = vmul.f32 %v1193, %v2296
        %v2458 = vmul.f32 %v1194, %v2300
        %v2459 = vmul.f32 %v1195, %v2296
        %v2460 = vmul.f32 %v1196, %v2300
        %v2461 = vmul.f32 %v1197, %v2304
        %v2462 = vmul.f32 %v1198, %v2308
        %v2463 = vmul.f32 %v1199, %v2304
        %v2464 = vmul.f32 %v1200, %v2308
        %v2465 = vmul.f32 %v1201, %v2304
        %v2466 = vmul.f32 %v1202, %v2308
        %v2467 = vmul.f32 %v1203, %v2304
        %v2468 = vmul.f32 %v1204, %v2308
        %v2469 = vmul.f32 %v1205, %v2312
        %v2470 = vmul.f32 %v1206, %v2316
        %v2471 = vmul.f32 %v1207, %v2312
        %v2472 = vmul.f32 %v1208, %v2316
        %v2473 = vmul.f32 %v1209, %v2312
        %v2474 = vmul.f32 %v1210, %v2316
        %v2475 = vmul.f32 %v1211, %v2312
        %v2476 = vmul.f32 %v1212, %v2316
        %v2477 = vmul.f32 %v1213, %v2320
        %v2478 = vmul.f32 %v1214, %v2324
        %v2479 = vmul.f32 %v1215, %v2320
        %v2480 = vmul.f32 %v1216, %v2324
        %v2481 = vmul.f32 %v1217, %v2320
        %v2482 = vmul.f32 %v1218, %v2324
        %v2483 = vmul.f32 %v1219, %v2320
        %v2484 = vmul.f32 %v1220, %v2324
        %v2489 = vcombine.low %v1241, %v1242
        %v2490 = vcombine.high %v1241, %v1242
        %v2492 = vunpack.c.l.s4 1966171168
        %v2493 = vunpack.c.0.s8 %v2492
        %v2494 = vlaneseq
        %v2495 = vshrl.u32 %v2494, 7
        %v2496 = vsub.s32 %v2493, %v2495
        %v2497 = vrot.slane %v2489, %v2496
        %v2499 = vunpack.c.l.s4 1966171168
        %v2500 = vunpack.c.0.s8 %v2499
        %v2501 = vlaneseq
        %v2502 = vshrl.u32 %v2501, 7
        %v2503 = vsub.s32 %v2500, %v2502
        %v2504 = vrot.slane %v2490, %v2503
        %v2505 = vcombine.high %v2497, %v2497
        %v2506 = vcombine.high %v2504, %v2504
        %v2508 = vunpack.c.l.s4 1966171168
        %v2509 = vunpack.c.0.s8 %v2508
        %v2510 = vlaneseq
        %v2511 = vshrl.u32 %v2510, 7
        %v2512 = vsub.s32 %v2509, %v2511
        %v2513 = vrot.slane %v2497, %v2512
        %v2515 = vunpack.c.l.s4 1966171168
        %v2516 = vunpack.c.0.s8 %v2515
        %v2517 = vlaneseq
        %v2518 = vshrl.u32 %v2517, 7
        %v2519 = vsub.s32 %v2516, %v2518
        %v2520 = vrot.slane %v2504, %v2519
        %v2522 = vunpack.c.l.s4 1966171168
        %v2523 = vunpack.c.0.s8 %v2522
        %v2524 = vlaneseq
        %v2525 = vshrl.u32 %v2524, 7
        %v2526 = vsub.s32 %v2523, %v2525
        %v2527 = vrot.slane %v2505, %v2526
        %v2529 = vunpack.c.l.s4 1966171168
        %v2530 = vunpack.c.0.s8 %v2529
        %v2531 = vlaneseq
        %v2532 = vshrl.u32 %v2531, 7
        %v2533 = vsub.s32 %v2530, %v2532
        %v2534 = vrot.slane %v2506, %v2533
        %v2535 = vcombine.high %v2513, %v2513
        %v2536 = vcombine.high %v2520, %v2520
        %v2537 = vcombine.high %v2527, %v2527
        %v2538 = vcombine.high %v2534, %v2534
        %v2539 = vcombine.low %v1243, %v1244
        %v2540 = vcombine.high %v1243, %v1244
        %v2542 = vunpack.c.l.s4 1966171168
        %v2543 = vunpack.c.0.s8 %v2542
        %v2544 = vlaneseq
        %v2545 = vshrl.u32 %v2544, 7
        %v2546 = vsub.s32 %v2543, %v2545
        %v2547 = vrot.slane %v2539, %v2546
        %v2549 = vunpack.c.l.s4 1966171168
        %v2550 = vunpack.c.0.s8 %v2549
        %v2551 = vlaneseq
        %v2552 = vshrl.u32 %v2551, 7
        %v2553 = vsub.s32 %v2550, %v2552
        %v2554 = vrot.slane %v2540, %v2553
        %v2555 = vcombine.high %v2547, %v2547
        %v2556 = vcombine.high %v2554, %v2554
        %v2558 = vunpack.c.l.s4 1966171168
        %v2559 = vunpack.c.0.s8 %v2558
        %v2560 = vlaneseq
        %v2561 = vshrl.u32 %v2560, 7
        %v2562 = vsub.s32 %v2559, %v2561
        %v2563 = vrot.slane %v2547, %v2562
        %v2565 = vunpack.c.l.s4 1966171168
        %v2566 = vunpack.c.0.s8 %v2565
        %v2567 = vlaneseq
        %v2568 = vshrl.u32 %v2567, 7
        %v2569 = vsub.s32 %v2566, %v2568
        %v2570 = vrot.slane %v2554, %v2569
        %v2572 = vunpack.c.l.s4 1966171168
        %v2573 = vunpack.c.0.s8 %v2572
        %v2574 = vlaneseq
        %v2575 = vshrl.u32 %v2574, 7
        %v2576 = vsub.s32 %v2573, %v2575
        %v2577 = vrot.slane %v2555, %v2576
        %v2579 = vunpack.c.l.s4 1966171168
        %v2580 = vunpack.c.0.s8 %v2579
        %v2581 = vlaneseq
        %v2582 = vshrl.u32 %v2581, 7
        %v2583 = vsub.s32 %v2580, %v2582
        %v2584 = vrot.slane %v2556, %v2583
        %v2585 = vcombine.high %v2563, %v2563
        %v2586 = vcombine.high %v2570, %v2570
        %v2587 = vcombine.high %v2577, %v2577
        %v2588 = vcombine.high %v2584, %v2584
        %v2589 = vlaneseq
        %v2590 = vshrl.u32 %v2589, 7
        %v2591 = vsub.s32 0, %v2590
        %v2592 = vrot.slane %v2513, %v2591
        %v2593 = vlaneseq
        %v2594 = vshrl.u32 %v2593, 7
        %v2595 = vsub.s32 1, %v2594
        %v2596 = vrot.slane %v2513, %v2595
        %v2597 = vlaneseq
        %v2598 = vshrl.u32 %v2597, 7
        %v2599 = vsub.s32 0, %v2598
        %v2600 = vrot.slane %v2527, %v2599
        %v2601 = vlaneseq
        %v2602 = vshrl.u32 %v2601, 7
        %v2603 = vsub.s32 1, %v2602
        %v2604 = vrot.slane %v2527, %v2603
        %v2605 = vlaneseq
        %v2606 = vshrl.u32 %v2605, 7
        %v2607 = vsub.s32 0, %v2606
        %v2608 = vrot.slane %v2535, %v2607
        %v2609 = vlaneseq
        %v2610 = vshrl.u32 %v2609, 7
        %v2611 = vsub.s32 1, %v2610
        %v2612 = vrot.slane %v2535, %v2611
        %v2613 = vlaneseq
        %v2614 = vshrl.u32 %v2613, 7
        %v2615 = vsub.s32 0, %v2614
        %v2616 = vrot.slane %v2537, %v2615
        %v2617 = vlaneseq
        %v2618 = vshrl.u32 %v2617, 7
        %v2619 = vsub.s32 1, %v2618
        %v2620 = vrot.slane %v2537, %v2619
        %v2621 = vlaneseq
        %v2622 = vshrl.u32 %v2621, 7
        %v2623 = vsub.s32 0, %v2622
        %v2624 = vrot.slane %v2520, %v2623
        %v2625 = vlaneseq
        %v2626 = vshrl.u32 %v2625, 7
        %v2627 = vsub.s32 1, %v2626
        %v2628 = vrot.slane %v2520, %v2627
        %v2629 = vlaneseq
        %v2630 = vshrl.u32 %v2629, 7
        %v2631 = vsub.s32 0, %v2630
        %v2632 = vrot.slane %v2534, %v2631
        %v2633 = vlaneseq
        %v2634 = vshrl.u32 %v2633, 7
        %v2635 = vsub.s32 1, %v2634
        %v2636 = vrot.slane %v2534, %v2635
        %v2637 = vlaneseq
        %v2638 = vshrl.u32 %v2637, 7
        %v2639 = vsub.s32 0, %v2638
        %v2640 = vrot.slane %v2536, %v2639
        %v2641 = vlaneseq
        %v2642 = vshrl.u32 %v2641, 7
        %v2643 = vsub.s32 1, %v2642
        %v2644 = vrot.slane %v2536, %v2643
        %v2645 = vlaneseq
        %v2646 = vshrl.u32 %v2645, 7
        %v2647 = vsub.s32 0, %v2646
        %v2648 = vrot.slane %v2538, %v2647
        %v2649 = vlaneseq
        %v2650 = vshrl.u32 %v2649, 7
        %v2651 = vsub.s32 1, %v2650
        %v2652 = vrot.slane %v2538, %v2651
        %v2653 = vlaneseq
        %v2654 = vshrl.u32 %v2653, 7
        %v2655 = vsub.s32 0, %v2654
        %v2656 = vrot.slane %v2563, %v2655
        %v2657 = vlaneseq
        %v2658 = vshrl.u32 %v2657, 7
        %v2659 = vsub.s32 1, %v2658
        %v2660 = vrot.slane %v2563, %v2659
        %v2661 = vlaneseq
        %v2662 = vshrl.u32 %v2661, 7
        %v2663 = vsub.s32 0, %v2662
        %v2664 = vrot.slane %v2577, %v2663
        %v2665 = vlaneseq
        %v2666 = vshrl.u32 %v2665, 7
        %v2667 = vsub.s32 1, %v2666
        %v2668 = vrot.slane %v2577, %v2667
        %v2669 = vlaneseq
        %v2670 = vshrl.u32 %v2669, 7
        %v2671 = vsub.s32 0, %v2670
        %v2672 = vrot.slane %v2585, %v2671
        %v2673 = vlaneseq
        %v2674 = vshrl.u32 %v2673, 7
        %v2675 = vsub.s32 1, %v2674
        %v2676 = vrot.slane %v2585, %v2675
        %v2677 = vlaneseq
        %v2678 = vshrl.u32 %v2677, 7
        %v2679 = vsub.s32 0, %v2678
        %v2680 = vrot.slane %v2587, %v2679
        %v2681 = vlaneseq
        %v2682 = vshrl.u32 %v2681, 7
        %v2683 = vsub.s32 1, %v2682
        %v2684 = vrot.slane %v2587, %v2683
        %v2685 = vlaneseq
        %v2686 = vshrl.u32 %v2685, 7
        %v2687 = vsub.s32 0, %v2686
        %v2688 = vrot.slane %v2570, %v2687
        %v2689 = vlaneseq
        %v2690 = vshrl.u32 %v2689, 7
        %v2691 = vsub.s32 1, %v2690
        %v2692 = vrot.slane %v2570, %v2691
        %v2693 = vlaneseq
        %v2694 = vshrl.u32 %v2693, 7
        %v2695 = vsub.s32 0, %v2694
        %v2696 = vrot.slane %v2584, %v2695
        %v2697 = vlaneseq
        %v2698 = vshrl.u32 %v2697, 7
        %v2699 = vsub.s32 1, %v2698
        %v2700 = vrot.slane %v2584, %v2699
        %v2701 = vlaneseq
        %v2702 = vshrl.u32 %v2701, 7
        %v2703 = vsub.s32 0, %v2702
        %v2704 = vrot.slane %v2586, %v2703
        %v2705 = vlaneseq
        %v2706 = vshrl.u32 %v2705, 7
        %v2707 = vsub.s32 1, %v2706
        %v2708 = vrot.slane %v2586, %v2707
        %v2709 = vlaneseq
        %v2710 = vshrl.u32 %v2709, 7
        %v2711 = vsub.s32 0, %v2710
        %v2712 = vrot.slane %v2588, %v2711
        %v2713 = vlaneseq
        %v2714 = vshrl.u32 %v2713, 7
        %v2715 = vsub.s32 1, %v2714
        %v2716 = vrot.slane %v2588, %v2715
        %v2749 = vadd.f32 %v2357, %v2592
        %v2750 = vadd.f32 %v2358, %v2596
        %v2751 = vadd.f32 %v2359, %v2592
        %v2752 = vadd.f32 %v2360, %v2596
        %v2753 = vadd.f32 %v2361, %v2592
        %v2754 = vadd.f32 %v2362, %v2596
        %v2755 = vadd.f32 %v2363, %v2592
        %v2756 = vadd.f32 %v2364, %v2596
        %v2757 = vadd.f32 %v2365, %v2600
        %v2758 = vadd.f32 %v2366, %v2604
        %v2759 = vadd.f32 %v2367, %v2600
        %v2760 = vadd.f32 %v2368, %v2604
        %v2761 = vadd.f32 %v2369, %v2600
        %v2762 = vadd.f32 %v2370, %v2604
        %v2763 = vadd.f32 %v2371, %v2600
        %v2764 = vadd.f32 %v2372, %v2604
        %v2765 = vadd.f32 %v2373, %v2608
        %v2766 = vadd.f32 %v2374, %v2612
        %v2767 = vadd.f32 %v2375, %v2608
        %v2768 = vadd.f32 %v2376, %v2612
        %v2769 = vadd.f32 %v2377, %v2608
        %v2770 = vadd.f32 %v2378, %v2612
        %v2771 = vadd.f32 %v2379, %v2608
        %v2772 = vadd.f32 %v2380, %v2612
        %v2773 = vadd.f32 %v2381, %v2616
        %v2774 = vadd.f32 %v2382, %v2620
        %v2775 = vadd.f32 %v2383, %v2616
        %v2776 = vadd.f32 %v2384, %v2620
        %v2777 = vadd.f32 %v2385, %v2616
        %v2778 = vadd.f32 %v2386, %v2620
        %v2779 = vadd.f32 %v2387, %v2616
        %v2780 = vadd.f32 %v2388, %v2620
        %v2781 = vadd.f32 %v2389, %v2624
        %v2782 = vadd.f32 %v2390, %v2628
        %v2783 = vadd.f32 %v2391, %v2624
        %v2784 = vadd.f32 %v2392, %v2628
        %v2785 = vadd.f32 %v2393, %v2624
        %v2786 = vadd.f32 %v2394, %v2628
        %v2787 = vadd.f32 %v2395, %v2624
        %v2788 = vadd.f32 %v2396, %v2628
        %v2789 = vadd.f32 %v2397, %v2632
        %v2790 = vadd.f32 %v2398, %v2636
        %v2791 = vadd.f32 %v2399, %v2632
        %v2792 = vadd.f32 %v2400, %v2636
        %v2793 = vadd.f32 %v2401, %v2632
        %v2794 = vadd.f32 %v2402, %v2636
        %v2795 = vadd.f32 %v2403, %v2632
        %v2796 = vadd.f32 %v2404, %v2636
        %v2797 = vadd.f32 %v2405, %v2640
        %v2798 = vadd.f32 %v2406, %v2644
        %v2799 = vadd.f32 %v2407, %v2640
        %v2800 = vadd.f32 %v2408, %v2644
        %v2801 = vadd.f32 %v2409, %v2640
        %v2802 = vadd.f32 %v2410, %v2644
        %v2803 = vadd.f32 %v2411, %v2640
        %v2804 = vadd.f32 %v2412, %v2644
        %v2805 = vadd.f32 %v2413, %v2648
        %v2806 = vadd.f32 %v2414, %v2652
        %v2807 = vadd.f32 %v2415, %v2648
        %v2808 = vadd.f32 %v2416, %v2652
        %v2809 = vadd.f32 %v2417, %v2648
        %v2810 = vadd.f32 %v2418, %v2652
        %v2811 = vadd.f32 %v2419, %v2648
        %v2812 = vadd.f32 %v2420, %v2652
        %v2813 = vadd.f32 %v2421, %v2656
        %v2814 = vadd.f32 %v2422, %v2660
        %v2815 = vadd.f32 %v2423, %v2656
        %v2816 = vadd.f32 %v2424, %v2660
        %v2817 = vadd.f32 %v2425, %v2656
        %v2818 = vadd.f32 %v2426, %v2660
        %v2819 = vadd.f32 %v2427, %v2656
        %v2820 = vadd.f32 %v2428, %v2660
        %v2821 = vadd.f32 %v2429, %v2664
        %v2822 = vadd.f32 %v2430, %v2668
        %v2823 = vadd.f32 %v2431, %v2664
        %v2824 = vadd.f32 %v2432, %v2668
        %v2825 = vadd.f32 %v2433, %v2664
        %v2826 = vadd.f32 %v2434, %v2668
        %v2827 = vadd.f32 %v2435, %v2664
        %v2828 = vadd.f32 %v2436, %v2668
        %v2829 = vadd.f32 %v2437, %v2672
        %v2830 = vadd.f32 %v2438, %v2676
        %v2831 = vadd.f32 %v2439, %v2672
        %v2832 = vadd.f32 %v2440, %v2676
        %v2833 = vadd.f32 %v2441, %v2672
        %v2834 = vadd.f32 %v2442, %v2676
        %v2835 = vadd.f32 %v2443, %v2672
        %v2836 = vadd.f32 %v2444, %v2676
        %v2837 = vadd.f32 %v2445, %v2680
        %v2838 = vadd.f32 %v2446, %v2684
        %v2839 = vadd.f32 %v2447, %v2680
        %v2840 = vadd.f32 %v2448, %v2684
        %v2841 = vadd.f32 %v2449, %v2680
        %v2842 = vadd.f32 %v2450, %v2684
        %v2843 = vadd.f32 %v2451, %v2680
        %v2844 = vadd.f32 %v2452, %v2684
        %v2845 = vadd.f32 %v2453, %v2688
        %v2846 = vadd.f32 %v2454, %v2692
        %v2847 = vadd.f32 %v2455, %v2688
        %v2848 = vadd.f32 %v2456, %v2692
        %v2849 = vadd.f32 %v2457, %v2688
        %v2850 = vadd.f32 %v2458, %v2692
        %v2851 = vadd.f32 %v2459, %v2688
        %v2852 = vadd.f32 %v2460, %v2692
        %v2853 = vadd.f32 %v2461, %v2696
        %v2854 = vadd.f32 %v2462, %v2700
        %v2855 = vadd.f32 %v2463, %v2696
        %v2856 = vadd.f32 %v2464, %v2700
        %v2857 = vadd.f32 %v2465, %v2696
        %v2858 = vadd.f32 %v2466, %v2700
        %v2859 = vadd.f32 %v2467, %v2696
        %v2860 = vadd.f32 %v2468, %v2700
        %v2861 = vadd.f32 %v2469, %v2704
        %v2862 = vadd.f32 %v2470, %v2708
        %v2863 = vadd.f32 %v2471, %v2704
        %v2864 = vadd.f32 %v2472, %v2708
        %v2865 = vadd.f32 %v2473, %v2704
        %v2866 = vadd.f32 %v2474, %v2708
        %v2867 = vadd.f32 %v2475, %v2704
        %v2868 = vadd.f32 %v2476, %v2708
        %v2869 = vadd.f32 %v2477, %v2712
        %v2870 = vadd.f32 %v2478, %v2716
        %v2871 = vadd.f32 %v2479, %v2712
        %v2872 = vadd.f32 %v2480, %v2716
        %v2873 = vadd.f32 %v2481, %v2712
        %v2874 = vadd.f32 %v2482, %v2716
        %v2875 = vadd.f32 %v2483, %v2712
        %v2876 = vadd.f32 %v2484, %v2716
        %v2877 = vpack.c.bf16 %v2751, %v2749
        %v2878 = vpack.c.bf16 %v2752, %v2750
        %v2879 = vpack.c.bf16 %v2755, %v2753
        %v2880 = vpack.c.bf16 %v2756, %v2754
        %v2881 = vpack.c.bf16 %v2759, %v2757
        %v2882 = vpack.c.bf16 %v2760, %v2758
        %v2883 = vpack.c.bf16 %v2763, %v2761
        %v2884 = vpack.c.bf16 %v2764, %v2762
        %v2885 = vpack.c.bf16 %v2767, %v2765
        %v2886 = vpack.c.bf16 %v2768, %v2766
        %v2887 = vpack.c.bf16 %v2771, %v2769
        %v2888 = vpack.c.bf16 %v2772, %v2770
        %v2889 = vpack.c.bf16 %v2775, %v2773
        %v2890 = vpack.c.bf16 %v2776, %v2774
        %v2891 = vpack.c.bf16 %v2779, %v2777
        %v2892 = vpack.c.bf16 %v2780, %v2778
        %v2893 = vpack.c.bf16 %v2783, %v2781
        %v2894 = vpack.c.bf16 %v2784, %v2782
        %v2895 = vpack.c.bf16 %v2787, %v2785
        %v2896 = vpack.c.bf16 %v2788, %v2786
        %v2897 = vpack.c.bf16 %v2791, %v2789
        %v2898 = vpack.c.bf16 %v2792, %v2790
        %v2899 = vpack.c.bf16 %v2795, %v2793
        %v2900 = vpack.c.bf16 %v2796, %v2794
        %v2901 = vpack.c.bf16 %v2799, %v2797
        %v2902 = vpack.c.bf16 %v2800, %v2798
        %v2903 = vpack.c.bf16 %v2803, %v2801
        %v2904 = vpack.c.bf16 %v2804, %v2802
        %v2905 = vpack.c.bf16 %v2807, %v2805
        %v2906 = vpack.c.bf16 %v2808, %v2806
        %v2907 = vpack.c.bf16 %v2811, %v2809
        %v2908 = vpack.c.bf16 %v2812, %v2810
        %v2909 = vpack.c.bf16 %v2815, %v2813
        %v2910 = vpack.c.bf16 %v2816, %v2814
        %v2911 = vpack.c.bf16 %v2819, %v2817
        %v2912 = vpack.c.bf16 %v2820, %v2818
        %v2913 = vpack.c.bf16 %v2823, %v2821
        %v2914 = vpack.c.bf16 %v2824, %v2822
        %v2915 = vpack.c.bf16 %v2827, %v2825
        %v2916 = vpack.c.bf16 %v2828, %v2826
        %v2917 = vpack.c.bf16 %v2831, %v2829
        %v2918 = vpack.c.bf16 %v2832, %v2830
        %v2919 = vpack.c.bf16 %v2835, %v2833
        %v2920 = vpack.c.bf16 %v2836, %v2834
        %v2921 = vpack.c.bf16 %v2839, %v2837
        %v2922 = vpack.c.bf16 %v2840, %v2838
        %v2923 = vpack.c.bf16 %v2843, %v2841
        %v2924 = vpack.c.bf16 %v2844, %v2842
        %v2925 = vpack.c.bf16 %v2847, %v2845
        %v2926 = vpack.c.bf16 %v2848, %v2846
        %v2927 = vpack.c.bf16 %v2851, %v2849
        %v2928 = vpack.c.bf16 %v2852, %v2850
        %v2929 = vpack.c.bf16 %v2855, %v2853
        %v2930 = vpack.c.bf16 %v2856, %v2854
        %v2931 = vpack.c.bf16 %v2859, %v2857
        %v2932 = vpack.c.bf16 %v2860, %v2858
        %v2933 = vpack.c.bf16 %v2863, %v2861
        %v2934 = vpack.c.bf16 %v2864, %v2862
        %v2935 = vpack.c.bf16 %v2867, %v2865
        %v2936 = vpack.c.bf16 %v2868, %v2866
        %v2937 = vpack.c.bf16 %v2871, %v2869
        %v2938 = vpack.c.bf16 %v2872, %v2870
        %v2939 = vpack.c.bf16 %v2875, %v2873
        %v2940 = vpack.c.bf16 %v2876, %v2874
        %v2941 = vld [vmem:[#allocation3] sm:$0xff]
        %v2942 = vld [vmem:[#allocation3 + $0x8] sm:$0xff]
        %v2943 = vld [vmem:[#allocation3 + $0x10] sm:$0xff]
        %v2944 = vld [vmem:[#allocation3 + $0x18] sm:$0xff]
        %v2945 = vld [vmem:[#allocation3 + $0x20] sm:$0xff]
        %v2946 = vld [vmem:[#allocation3 + $0x28] sm:$0xff]
        %v2947 = vld [vmem:[#allocation3 + $0x30] sm:$0xff]
        %v2948 = vld [vmem:[#allocation3 + $0x38] sm:$0xff]
        %v2949 = vld [vmem:[#allocation2] sm:$0xff]
        %v2950 = vld [vmem:[#allocation2 + $0x8] sm:$0xff]
        %v2951 = vld [vmem:[#allocation2 + $0x10] sm:$0xff]
        %v2952 = vld [vmem:[#allocation2 + $0x18] sm:$0xff]
        %v2957 = vunpack.c.l.b16 %v2941
        %v2958 = vunpack.c.h.b16 %v2941
        %v2959 = vunpack.c.l.b16 %v2942
        %v2960 = vunpack.c.h.b16 %v2942
        %v2961 = vunpack.c.l.b16 %v2945
        %v2962 = vunpack.c.h.b16 %v2945
        %v2963 = vunpack.c.l.b16 %v2946
        %v2964 = vunpack.c.h.b16 %v2946
        %v2965 = vpack.c.b16 %v2961, %v2957
        %v2966 = vpack.c.b16 %v2962, %v2958
        %v2967 = vpack.c.b16 %v2963, %v2959
        %v2968 = vpack.c.b16 %v2964, %v2960
        %2973 = vmatprep.subr.bf16.mxu0 %v2044
        %2974 = vmatpush1.bf16.msra.mxu0 %v2043
        %2975 = vmatprep.subr.bf16.mxu0 %v2042
        %2976 = vmatpush1.bf16.msra.mxu0 %v2041
        %2977 = vmatprep.subr.bf16.mxu0 %v2040
        %2978 = vmatpush1.bf16.msra.mxu0 %v2039
        %2979 = vmatprep.subr.bf16.mxu0 %v2038
        %2980 = vmatpush1.bf16.msra.mxu0 %v2037
        %2981 = vmatprep.subr.bf16.mxu0 %v2036
        %2982 = vmatpush1.bf16.msra.mxu0 %v2035
        %2983 = vmatprep.subr.bf16.mxu0 %v2034
        %2984 = vmatpush1.bf16.msra.mxu0 %v2033
        %2985 = vmatprep.subr.bf16.mxu0 %v2032
        %2986 = vmatpush1.bf16.msra.mxu0 %v2031
        %2987 = vmatprep.subr.bf16.mxu0 %v2030
        %2988 = vmatpush1.bf16.msra.mxu0 %v2029
        %2989 = vmatprep.subr.bf16.mxu0 %v2060
        %2990 = vmatpush2.bf16.msra.mxu0 %v2059
        %2991 = vmatprep.subr.bf16.mxu0 %v2058
        %2992 = vmatpush2.bf16.msra.mxu0 %v2057
        %2993 = vmatprep.subr.bf16.mxu0 %v2056
        %2994 = vmatpush2.bf16.msra.mxu0 %v2055
        %2995 = vmatprep.subr.bf16.mxu0 %v2054
        %2996 = vmatpush2.bf16.msra.mxu0 %v2053
        %2997 = vmatprep.subr.bf16.mxu0 %v2052
        %2998 = vmatpush2.bf16.msra.mxu0 %v2051
        %2999 = vmatprep.subr.bf16.mxu0 %v2050
        %3000 = vmatpush2.bf16.msra.mxu0 %v2049
        %3001 = vmatprep.subr.bf16.mxu0 %v2048
        %3002 = vmatpush2.bf16.msra.mxu0 %v2047
        %3003 = vmatprep.subr.bf16.mxu0 %v2046
        %3004 = vmatpush2.bf16.msra.mxu0 %v2045
        %3005 = vmatprep.mubr.bf16.mxu0 %v2966
        %3006 = vmatmul.mubr.bf16.gmra.mxu0 %v2965
        %v3007 = vpop.f32.mrf.mxu0
        %v3008 = vadd.f32 0.0, %v3007
        %v3009 = vpop.f32.mrf.mxu0
        %v3010 = vadd.f32 0.0, %v3009
        %v3011 = vpop.f32.mrf.mxu0
        %v3012 = vadd.f32 0.0, %v3011
        %v3013 = vpop.f32.mrf.mxu0
        %v3014 = vadd.f32 0.0, %v3013
        %3015 = vdwg.mxu0
        %3016 = vmatprep.subr.bf16.mxu0 %v2076
        %3017 = vmatpush1.bf16.msra.mxu0 %v2075
        %3018 = vmatprep.subr.bf16.mxu0 %v2074
        %3019 = vmatpush1.bf16.msra.mxu0 %v2073
        %3020 = vmatprep.subr.bf16.mxu0 %v2072
        %3021 = vmatpush1.bf16.msra.mxu0 %v2071
        %3022 = vmatprep.subr.bf16.mxu0 %v2070
        %3023 = vmatpush1.bf16.msra.mxu0 %v2069
        %3024 = vmatprep.subr.bf16.mxu0 %v2068
        %3025 = vmatpush1.bf16.msra.mxu0 %v2067
        %3026 = vmatprep.subr.bf16.mxu0 %v2066
        %3027 = vmatpush1.bf16.msra.mxu0 %v2065
        %3028 = vmatprep.subr.bf16.mxu0 %v2064
        %3029 = vmatpush1.bf16.msra.mxu0 %v2063
        %3030 = vmatprep.subr.bf16.mxu0 %v2062
        %3031 = vmatpush1.bf16.msra.mxu0 %v2061
        %3032 = vmatprep.subr.bf16.mxu0 %v2092
        %3033 = vmatpush2.bf16.msra.mxu0 %v2091
        %3034 = vmatprep.subr.bf16.mxu0 %v2090
        %3035 = vmatpush2.bf16.msra.mxu0 %v2089
        %3036 = vmatprep.subr.bf16.mxu0 %v2088
        %3037 = vmatpush2.bf16.msra.mxu0 %v2087
        %3038 = vmatprep.subr.bf16.mxu0 %v2086
        %3039 = vmatpush2.bf16.msra.mxu0 %v2085
        %3040 = vmatprep.subr.bf16.mxu0 %v2084
        %3041 = vmatpush2.bf16.msra.mxu0 %v2083
        %3042 = vmatprep.subr.bf16.mxu0 %v2082
        %3043 = vmatpush2.bf16.msra.mxu0 %v2081
        %3044 = vmatprep.subr.bf16.mxu0 %v2080
        %3045 = vmatpush2.bf16.msra.mxu0 %v2079
        %3046 = vmatprep.subr.bf16.mxu0 %v2078
        %3047 = vmatpush2.bf16.msra.mxu0 %v2077
        %3048 = vmatprep.mubr.bf16.mxu0 %v2968
        %3049 = vmatmul.mubr.bf16.gmra.mxu0 %v2967
        %v3050 = vpop.f32.mrf.mxu0
        %v3051 = vadd.f32 %v3008, %v3050
        %v3052 = vpop.f32.mrf.mxu0
        %v3053 = vadd.f32 %v3010, %v3052
        %v3054 = vpop.f32.mrf.mxu0
        %v3055 = vadd.f32 %v3012, %v3054
        %v3056 = vpop.f32.mrf.mxu0
        %v3057 = vadd.f32 %v3014, %v3056
        %3058 = vdwg.mxu0
        %v3059 = vadd.f32 %v2949, %v3051
        %v3060 = vadd.f32 %v2950, %v3053
        %v3061 = vadd.f32 %v2951, %v3055
        %v3062 = vadd.f32 %v2952, %v3057
        %3063 = vst [vmem:[#allocation2] sm:$0xff] %v3059
        %3064 = vst [vmem:[#allocation2 + $0x8] sm:$0xff] %v3060
        %3065 = vst [vmem:[#allocation2 + $0x10] sm:$0xff] %v3061
        %3066 = vst [vmem:[#allocation2 + $0x18] sm:$0xff] %v3062
        %v3067 = vld [vmem:[#allocation2] sm:$0xff]
        %v3068 = vld [vmem:[#allocation2 + $0x8] sm:$0xff]
        %v3069 = vld [vmem:[#allocation2 + $0x10] sm:$0xff]
        %v3070 = vld [vmem:[#allocation2 + $0x18] sm:$0xff]
        %v3075 = vunpack.c.l.b16 %v2943
        %v3076 = vunpack.c.h.b16 %v2943
        %v3077 = vunpack.c.l.b16 %v2944
        %v3078 = vunpack.c.h.b16 %v2944
        %v3079 = vunpack.c.l.b16 %v2947
        %v3080 = vunpack.c.h.b16 %v2947
        %v3081 = vunpack.c.l.b16 %v2948
        %v3082 = vunpack.c.h.b16 %v2948
        %v3083 = vpack.c.b16 %v3079, %v3075
        %v3084 = vpack.c.b16 %v3080, %v3076
        %v3085 = vpack.c.b16 %v3081, %v3077
        %v3086 = vpack.c.b16 %v3082, %v3078
        %3091 = vmatprep.subr.bf16.mxu0 %v2892
        %3092 = vmatpush1.bf16.msra.mxu0 %v2891
        %3093 = vmatprep.subr.bf16.mxu0 %v2890
        %3094 = vmatpush1.bf16.msra.mxu0 %v2889
        %3095 = vmatprep.subr.bf16.mxu0 %v2888
        %3096 = vmatpush1.bf16.msra.mxu0 %v2887
        %3097 = vmatprep.subr.bf16.mxu0 %v2886
        %3098 = vmatpush1.bf16.msra.mxu0 %v2885
        %3099 = vmatprep.subr.bf16.mxu0 %v2884
        %3100 = vmatpush1.bf16.msra.mxu0 %v2883
        %3101 = vmatprep.subr.bf16.mxu0 %v2882
        %3102 = vmatpush1.bf16.msra.mxu0 %v2881
        %3103 = vmatprep.subr.bf16.mxu0 %v2880
        %3104 = vmatpush1.bf16.msra.mxu0 %v2879
        %3105 = vmatprep.subr.bf16.mxu0 %v2878
        %3106 = vmatpush1.bf16.msra.mxu0 %v2877
        %3107 = vmatprep.subr.bf16.mxu0 %v2908
        %3108 = vmatpush2.bf16.msra.mxu0 %v2907
        %3109 = vmatprep.subr.bf16.mxu0 %v2906
        %3110 = vmatpush2.bf16.msra.mxu0 %v2905
        %3111 = vmatprep.subr.bf16.mxu0 %v2904
        %3112 = vmatpush2.bf16.msra.mxu0 %v2903
        %3113 = vmatprep.subr.bf16.mxu0 %v2902
        %3114 = vmatpush2.bf16.msra.mxu0 %v2901
        %3115 = vmatprep.subr.bf16.mxu0 %v2900
        %3116 = vmatpush2.bf16.msra.mxu0 %v2899
        %3117 = vmatprep.subr.bf16.mxu0 %v2898
        %3118 = vmatpush2.bf16.msra.mxu0 %v2897
        %3119 = vmatprep.subr.bf16.mxu0 %v2896
        %3120 = vmatpush2.bf16.msra.mxu0 %v2895
        %3121 = vmatprep.subr.bf16.mxu0 %v2894
        %3122 = vmatpush2.bf16.msra.mxu0 %v2893
        %3123 = vmatprep.mubr.bf16.mxu0 %v3084
        %3124 = vmatmul.mubr.bf16.gmra.mxu0 %v3083
        %v3125 = vpop.f32.mrf.mxu0
        %v3126 = vadd.f32 0.0, %v3125
        %v3127 = vpop.f32.mrf.mxu0
        %v3128 = vadd.f32 0.0, %v3127
        %v3129 = vpop.f32.mrf.mxu0
        %v3130 = vadd.f32 0.0, %v3129
        %v3131 = vpop.f32.mrf.mxu0
        %v3132 = vadd.f32 0.0, %v3131
        %3133 = vdwg.mxu0
        %3134 = vmatprep.subr.bf16.mxu0 %v2924
        %3135 = vmatpush1.bf16.msra.mxu0 %v2923
        %3136 = vmatprep.subr.bf16.mxu0 %v2922
        %3137 = vmatpush1.bf16.msra.mxu0 %v2921
        %3138 = vmatprep.subr.bf16.mxu0 %v2920
        %3139 = vmatpush1.bf16.msra.mxu0 %v2919
        %3140 = vmatprep.subr.bf16.mxu0 %v2918
        %3141 = vmatpush1.bf16.msra.mxu0 %v2917
        %3142 = vmatprep.subr.bf16.mxu0 %v2916
        %3143 = vmatpush1.bf16.msra.mxu0 %v2915
        %3144 = vmatprep.subr.bf16.mxu0 %v2914
        %3145 = vmatpush1.bf16.msra.mxu0 %v2913
        %3146 = vmatprep.subr.bf16.mxu0 %v2912
        %3147 = vmatpush1.bf16.msra.mxu0 %v2911
        %3148 = vmatprep.subr.bf16.mxu0 %v2910
        %3149 = vmatpush1.bf16.msra.mxu0 %v2909
        %3150 = vmatprep.subr.bf16.mxu0 %v2940
        %3151 = vmatpush2.bf16.msra.mxu0 %v2939
        %3152 = vmatprep.subr.bf16.mxu0 %v2938
        %3153 = vmatpush2.bf16.msra.mxu0 %v2937
        %3154 = vmatprep.subr.bf16.mxu0 %v2936
        %3155 = vmatpush2.bf16.msra.mxu0 %v2935
        %3156 = vmatprep.subr.bf16.mxu0 %v2934
        %3157 = vmatpush2.bf16.msra.mxu0 %v2933
        %3158 = vmatprep.subr.bf16.mxu0 %v2932
        %3159 = vmatpush2.bf16.msra.mxu0 %v2931
        %3160 = vmatprep.subr.bf16.mxu0 %v2930
        %3161 = vmatpush2.bf16.msra.mxu0 %v2929
        %3162 = vmatprep.subr.bf16.mxu0 %v2928
        %3163 = vmatpush2.bf16.msra.mxu0 %v2927
        %3164 = vmatprep.subr.bf16.mxu0 %v2926
        %3165 = vmatpush2.bf16.msra.mxu0 %v2925
        %3166 = vmatprep.mubr.bf16.mxu0 %v3086
        %3167 = vmatmul.mubr.bf16.gmra.mxu0 %v3085
        %v3168 = vpop.f32.mrf.mxu0
        %v3169 = vadd.f32 %v3126, %v3168
        %v3170 = vpop.f32.mrf.mxu0
        %v3171 = vadd.f32 %v3128, %v3170
        %v3172 = vpop.f32.mrf.mxu0
        %v3173 = vadd.f32 %v3130, %v3172
        %v3174 = vpop.f32.mrf.mxu0
        %v3175 = vadd.f32 %v3132, %v3174
        %3176 = vdwg.mxu0
        %v3177 = vadd.f32 %v3067, %v3169
        %v3178 = vadd.f32 %v3068, %v3171
        %v3179 = vadd.f32 %v3069, %v3173
        %v3180 = vadd.f32 %v3070, %v3175
        %3181 = vst [vmem:[#allocation2] sm:$0xff] %v3177
        %3182 = vst [vmem:[#allocation2 + $0x8] sm:$0xff] %v3178
        %3183 = vst [vmem:[#allocation2 + $0x10] sm:$0xff] %v3179
        %3184 = vst [vmem:[#allocation2 + $0x18] sm:$0xff] %v3180
        // Predicated region
        $region61: #{tpu_custom_call.1} parent=39 // pred_check
          %p3185 = pneg %p413
        $region62: #{tpu_custom_call.1} parent=39 // pred_check_branch
          %3187 = sbr.rel (%p3185) target = $region64
        $region63: #{tpu_custom_call.1} parent=39 // pred_region
          %v3188 = vld [vmem:[#allocation2] sm:$0xff]
          %v3189 = vld [vmem:[#allocation2 + $0x8] sm:$0xff]
          %v3190 = vld [vmem:[#allocation2 + $0x10] sm:$0xff]
          %v3191 = vld [vmem:[#allocation2 + $0x18] sm:$0xff]
          %v3192 = vld [vmem:[%s409] sm:$0x3]
          %v3194 = vlaneseq
          %v3195 = vshrl.u32 %v3194, 7
          %v3196 = vsub.s32 0, %v3195
          %v3197 = vrot.slane %v3192, %v3196
          %v3198 = vlaneseq
          %v3199 = vshrl.u32 %v3198, 7
          %v3200 = vsub.s32 1, %v3199
          %v3201 = vrot.slane %v3192, %v3200
          %v3204 = vadd.f32 %v3188, %v3197
          %v3205 = vadd.f32 %v3189, %v3201
          %v3206 = vadd.f32 %v3190, %v3197
          %v3207 = vadd.f32 %v3191, %v3201
          %3208 = vst [vmem:[%s397] sm:$0xff] %v3204
          %3209 = vst [vmem:[%s397 + $0x8] sm:$0xff] %v3205
          %3210 = vst [vmem:[%s397 + $0x10] sm:$0xff] %v3206
          %3211 = vst [vmem:[%s397 + $0x18] sm:$0xff] %v3207
        $region64: #{tpu_custom_call.1} parent=39 // pred_fallthru
          _
        %s3212 = sand.u32 %s193, 1
        %s3213 = scalar_lea.sflag [#allocation5], %s3212
        %s3214 = sand.u32 %s193, 1
        %s3215 = smul.addr %s3214, 32
        %s3216 = scalar_lea.vmem [#allocation11], %s3215
        // Predicated region
        $region65: #{tpu_custom_call.1} parent=39 // pred_check
          %p3217 = pneg %p203
        $region66: #{tpu_custom_call.1} parent=39 // pred_check_branch
          %3219 = sbr.rel (%p3217) target = $region68
        $region67: #{tpu_custom_call.1} parent=39 // pred_region
          %s3220 = smul.u32 2, %s31
          %s3221 = smul.u32 2, %s32
          %s3223 = ssub.s32 512, 512
          %3224 = vsyncadd %s3213, %s3223
          %s3225 = smul.addr %s3220, 4
          %s3226 = sadd.s32 %s3221, %s3225
          %s3227 = smul.addr %s3226, 128
          %s3228 = scalar_lea.hbm %s5, %s3227
          %s3229 = sshll.u32 %s3216, 4
          %s3230 = int_to_ptr.vmem [resolvable:$true] %s3229
          %3235 = dma.vmem_to_hbm [thread:$0]  %s3230, 512, %s3228, %s3213, 256, 512, 16
        $region68: #{tpu_custom_call.1} parent=39 // pred_fallthru
          _
      $region40: #{tpu_custom_call.1} parent=5 // pred_fallthru
        _
      %p3236 = scmp.le.s32.totalorder 2, %s21
      // Predicated region
      $region69: #{tpu_custom_call.1} parent=5 // pred_check
        %p3237 = pneg %p3236
      $region70: #{tpu_custom_call.1} parent=5 // pred_check_branch
        %3239 = sbr.rel (%p3237) target = $region72
      $region71: #{tpu_custom_call.1} parent=5 // pred_region
        %s3240 = ssub.s32 %s21, 2
        // Predicated region
        $region73: #{tpu_custom_call.1} parent=71 // pred_check
          %p3241 = pneg %p209
        $region74: #{tpu_custom_call.1} parent=71 // pred_check_branch
          %3243 = sbr.rel (%p3241) target = $region76
        $region75: #{tpu_custom_call.1} parent=71 // pred_region
          %s3244 = sand.u32 %s194, 1
          %s3245 = scalar_lea.sflag [#allocation5], %s3244
          %s3246 = sand.u32 %s194, 1
          %s3247 = smul.addr %s3246, 32
          %s3248 = scalar_lea.vmem [#allocation11], %s3247
          %3249 = dma.done %s3245, 512
        $region76: #{tpu_custom_call.1} parent=71 // pred_fallthru
          _
      $region72: #{tpu_custom_call.1} parent=5 // pred_fallthru
        _
    $region6: #{tpu_custom_call.1} parent=1 // loop_footer
      %s25 = sadd.s32 1, %s21
    $region7: #{tpu_custom_call.1} parent=1 // loop_footer_branch
      %20 = sbr.rel target = $region3
    $region8: #{tpu_custom_call.1} parent=1 // loop_exit
      _
    %3250 = vsyncpa [#allocation4], 1
    %s3251 = scalar_lea.sflag [#allocation4], 1
    %3252 = vsyncpa %s3251, 1
    %3253 = vsyncpa [#allocation7], 1
    %s3254 = scalar_lea.sflag [#allocation7], 1
    %3255 = vsyncpa %s3254, 1
    %3256 = vsyncpa [#allocation10], 1
    %s3257 = scalar_lea.sflag [#allocation10], 1
    %3258 = vsyncpa %s3257, 1
    %3259 = vsyncpa [#allocation5], 1
    %s3260 = scalar_lea.sflag [#allocation5], 1
    %3261 = vsyncpa %s3260, 1

</llo_original>
